<compile_context>
chip_gen: v7x
topology: tpu7x:2x2x1
jax: 0.10.0
libtpu: 0.0.40
codegen_flags: <defaults>
</compile_context>

<pallas_src>
import math
import jax
import jax.numpy as jnp
from jax.experimental import pallas as pl
from jax.experimental.pallas import tpu as pltpu

# Small, module-consistent sizes
B = 4           # graphs per batch (grid axis)
N = 64          # number of graph nodes
NFEAT = 32
NHIDDEN = 32
NCLASS = 8
NLAYERS = 4
THETA = 0.25    # forward() overwrites theta with 0.25 regardless of lamda/l
VARIANT = False


def gcnii_kernel(x_ref, adj_ref, dis_ref,      # bf16 [N,NFEAT], [N,N], [N,N]  (per graph)
                 w0_ref, w1_ref,               # bf16 [NFEAT,NHIDDEN] x2
                 whi_ref,                      # bf16 [NLAYERS,NHIDDEN,NHIDDEN]  (1-a)*convw_eff
                 wh0cat_ref,                   # bf16 [NHIDDEN, NLAYERS*NHIDDEN] concat_l a*convw_eff
                 fcw_ref, fcb_ref,             # bf16 [NHIDDEN,NCLASS], f32 [1,NCLASS]
                 out_ref):                     # f32  [N,NCLASS]
    f32 = jnp.float32
    bf16 = jnp.bfloat16

    x = x_ref[...]
    adj = adj_ref[...]
    dis = dis_ref[...]

    # Input projections (two separate matmuls; no lane-32 split of a fused result).
    xw0 = jnp.dot(x, w0_ref[...], preferred_element_type=f32)
    xw1 = jnp.dot(x, w1_ref[...], preferred_element_type=f32)
    li = jnp.maximum(jnp.dot(adj, xw0.astype(bf16), preferred_element_type=f32), 0.0)
    h0 = jnp.maximum(jnp.dot(dis, xw1.astype(bf16), preferred_element_type=f32), 0.0)

    # h0 contribution to every layer in one lane-dense [N,H]@[H,L*H] matmul (off the
    # serial layer chain); per-layer slices are static and independent of the chain.
    h0w = jnp.dot(h0.astype(bf16), wh0cat_ref[...], preferred_element_type=f32)  # [N, L*H]

    # GraphConvolution layers (variant=False, residual=False), Python-unrolled.
    # whi_ref[l] already holds (1-a_l)*(theta*W_l + (1-theta)*I), so each layer is
    # two chained matmuls + add + ReLU with no scalar blends.
    for l in range(NLAYERS):
        h0w_l = h0w[:, l * NHIDDEN:(l + 1) * NHIDDEN]
        hi = jnp.dot(adj, li.astype(bf16), preferred_element_type=f32)
        pre = jnp.dot(hi.astype(bf16), whi_ref[l], preferred_element_type=f32) + h0w_l
        li = jnp.maximum(pre, 0.0)

    # Final Linear (weight pre-transposed to [NHIDDEN, NCLASS]) + stable log_softmax(dim=1).
    logits = jnp.dot(li.astype(bf16), fcw_ref[...], preferred_element_type=f32) + fcb_ref[...]
    m = jnp.max(logits, axis=1, keepdims=True)
    lse = jnp.log(jnp.sum(jnp.exp(logits - m), axis=1, keepdims=True)) + m
    out_ref[...] = logits - lse


@jax.jit
def gcnii_forward(x, adj, dis, params):
    """x: [B,N,NFEAT], adj/dis: [B,N,N] (dense, row-normalized). Returns [B,N,NCLASS] f32."""
    alphas, w0, w1, convw, fcw_t, fcb = params
    bf16 = jnp.bfloat16

    # Wrapper-side (plain XLA) precompute — hoisted out of the kernel:
    a = jax.nn.sigmoid(alphas) * 0.5                                  # [NLAYERS]
    eye = jnp.eye(NHIDDEN, dtype=jnp.float32)
    convw_eff = THETA * convw + (1.0 - THETA) * eye[None, :, :]       # fold residual into weight
    w_hi = (1.0 - a)[:, None, None] * convw_eff                       # [L, H, H]
    w_h0 = a[:, None, None] * convw_eff                               # [L, H, H]
    # concat over layers on the out axis: slice [:, l*H:(l+1)*H] == w_h0[l]
    w_h0_cat = jnp.transpose(w_h0, (1, 0, 2)).reshape(NHIDDEN, NLAYERS * NHIDDEN)

    # bf16 matmul operands; f32 accumulation / elementwise kept inside the kernel.
    xb, adjb, disb = x.astype(bf16), adj.astype(bf16), dis.astype(bf16)
    w0b, w1b = w0.astype(bf16), w1.astype(bf16)
    w_hi_b, w_h0_cat_b = w_hi.astype(bf16), w_h0_cat.astype(bf16)
    fcw_b = fcw_t.astype(bf16)

    graph3 = lambda shp: pl.BlockSpec((None,) + shp, lambda b: (b, 0, 0))
    const2 = lambda shp: pl.BlockSpec(shp, lambda b: (0, 0))
    const3 = lambda shp: pl.BlockSpec(shp, lambda b: (0, 0, 0))

    return pl.pallas_call(
        gcnii_kernel,
        out_shape=jax.ShapeDtypeStruct((B, N, NCLASS), jnp.float32),
        grid=(B,),
        in_specs=[graph3((N, NFEAT)),                       # x
                  graph3((N, N)),                           # adj
                  graph3((N, N)),                           # dis
                  const2((NFEAT, NHIDDEN)),                 # w0
                  const2((NFEAT, NHIDDEN)),                 # w1
                  const3((NLAYERS, NHIDDEN, NHIDDEN)),      # w_hi
                  const2((NHIDDEN, NLAYERS * NHIDDEN)),     # w_h0_cat
                  const2((NHIDDEN, NCLASS)),                # fcw
                  const2((1, NCLASS))],                     # fcb (f32)
        out_specs=graph3((N, NCLASS)),
        compiler_params=pltpu.CompilerParams(
            dimension_semantics=("parallel",)),             # shard batch over TCs on v7x
    )(xb, adjb, disb, w0b, w1b, w_hi_b, w_h0_cat_b, fcw_b, fcb)


def gcnii_reference(x, adj, dis, params):
    """Pure-JAX f32 reference with identical math, for a correctness check."""
    alphas, w0, w1, convw, fcw_t, fcb = params

    def one_graph(xg, adjg, disg):
        li = jax.nn.relu(adjg @ (xg @ w0))
        h0 = jax.nn.relu(disg @ (xg @ w1))
        for l in range(NLAYERS):
            a = jax.nn.sigmoid(alphas[l]) * 0.5
            hi = adjg @ li
            support = (1.0 - a) * hi + a * h0
            li = jax.nn.relu(THETA * (support @ convw[l]) + (1.0 - THETA) * support)
        logits = li @ fcw_t + fcb
        return jax.nn.log_softmax(logits, axis=1)

    return jax.vmap(one_graph)(x, adj, dis)


def init_params(key):
    ks = jax.random.split(key, 8)
    stdv_h = 1.0 / math.sqrt(NHIDDEN)
    # SubGraphConvolution weights: uniform(-1/sqrt(out), 1/sqrt(out)), shape [NFEAT, NHIDDEN]
    w0 = jax.random.uniform(ks[0], (NFEAT, NHIDDEN), jnp.float32, -stdv_h, stdv_h)
    w1 = jax.random.uniform(ks[1], (NFEAT, NHIDDEN), jnp.float32, -stdv_h, stdv_h)
    # GraphConvolution weights: [NLAYERS, NHIDDEN, NHIDDEN], alpha init 0.4
    convw = jax.random.uniform(ks[2], (NLAYERS, NHIDDEN, NHIDDEN), jnp.float32, -stdv_h, stdv_h)
    alphas = jnp.full((NLAYERS,), 0.4, jnp.float32)
    # final nn.Linear(NHIDDEN, NCLASS): pass weight pre-transposed to [NHIDDEN, NCLASS]
    bound = 1.0 / math.sqrt(NHIDDEN)
    fcw_t = jax.random.uniform(ks[3], (NHIDDEN, NCLASS), jnp.float32, -bound, bound)
    fcb = jax.random.uniform(ks[4], (1, NCLASS), jnp.float32, -bound, bound)
    return alphas, w0, w1, convw, fcw_t, fcb


if __name__ == "__main__":
    key = jax.random.PRNGKey(0)
    kx, kadj, kdis, kp = jax.random.split(key, 4)

    x = jax.random.normal(kx, (B, N, NFEAT), jnp.float32)
    # symmetric row-normalized "adjacency"-like dense matrices (spmm -> dense mm)
    adj_raw = jax.random.uniform(kadj, (B, N, N), jnp.float32)
    adj = adj_raw / jnp.sum(adj_raw, axis=2, keepdims=True)
    dis_raw = jax.random.uniform(kdis, (B, N, N), jnp.float32)
    dis = dis_raw / jnp.sum(dis_raw, axis=2, keepdims=True)

    params = init_params(kp)

    out = gcnii_forward(x, adj, dis, params)
    out = jax.block_until_ready(out)

    ref = gcnii_reference(x, adj, dis, params)
    assert out.shape == (B, N, NCLASS)
    # bf16 matmul operands (f32 accumulation): loosened tolerance vs f32 reference.
    assert jnp.allclose(out, ref, atol=3e-2, rtol=3e-2), "mismatch vs JAX reference"

    print("KERNEL_OK")
</pallas_src>

<mosaic_0001>
module attributes {stable_mosaic.version = 11 : i64} {
  func.func @gcnii_kernel(%arg0: i32, %arg1: memref<1x64x32xbf16, #tpu.memory_space<vmem>>, %arg2: memref<1x64x64xbf16, #tpu.memory_space<vmem>>, %arg3: memref<1x64x64xbf16, #tpu.memory_space<vmem>>, %arg4: memref<32x32xbf16, #tpu.memory_space<vmem>>, %arg5: memref<32x32xbf16, #tpu.memory_space<vmem>>, %arg6: memref<4x32x32xbf16, #tpu.memory_space<vmem>>, %arg7: memref<32x128xbf16, #tpu.memory_space<vmem>>, %arg8: memref<32x8xbf16, #tpu.memory_space<vmem>>, %arg9: memref<1x8xf32, #tpu.memory_space<vmem>>, %arg10: memref<1x64x8xf32, #tpu.memory_space<vmem>>) attributes {dimension_semantics = [#tpu.dimension_semantics<parallel>], iteration_bounds = array<i64: 4>, scalar_prefetch = 0 : i64, scratch_operands = 0 : i64, tpu.core_type = #tpu.core_type<tc>, window_params = [{transform_indices = @transform_0, window_bounds = array<i64: 1, 64, 32>}, {transform_indices = @transform_1, window_bounds = array<i64: 1, 64, 64>}, {transform_indices = @transform_2, window_bounds = array<i64: 1, 64, 64>}, {pipeline_mode = #tpu.pipeline_mode<synchronous>, transform_indices = @transform_3, window_bounds = array<i64: 32, 32>}, {pipeline_mode = #tpu.pipeline_mode<synchronous>, transform_indices = @transform_4, window_bounds = array<i64: 32, 32>}, {pipeline_mode = #tpu.pipeline_mode<synchronous>, transform_indices = @transform_5, window_bounds = array<i64: 4, 32, 32>}, {pipeline_mode = #tpu.pipeline_mode<synchronous>, transform_indices = @transform_6, window_bounds = array<i64: 32, 128>}, {pipeline_mode = #tpu.pipeline_mode<synchronous>, transform_indices = @transform_7, window_bounds = array<i64: 32, 8>}, {pipeline_mode = #tpu.pipeline_mode<synchronous>, transform_indices = @transform_8, window_bounds = array<i64: 1, 8>}, {transform_indices = @transform_9, window_bounds = array<i64: 1, 64, 8>}]} {
    %c0 = arith.constant 0 : index
    %c0_0 = arith.constant 0 : index
    %c0_1 = arith.constant 0 : index
    %0 = vector.load %arg1[%c0, %c0_0, %c0_1] : memref<1x64x32xbf16, #tpu.memory_space<vmem>>, vector<1x64x32xbf16>
    %1 = vector.shape_cast %0 : vector<1x64x32xbf16> to vector<64x32xbf16>
    %c0_2 = arith.constant 0 : index
    %c0_3 = arith.constant 0 : index
    %c0_4 = arith.constant 0 : index
    %2 = vector.load %arg2[%c0_2, %c0_3, %c0_4] : memref<1x64x64xbf16, #tpu.memory_space<vmem>>, vector<1x64x64xbf16>
    %3 = vector.shape_cast %2 : vector<1x64x64xbf16> to vector<64x64xbf16>
    %c0_5 = arith.constant 0 : index
    %c0_6 = arith.constant 0 : index
    %c0_7 = arith.constant 0 : index
    %4 = vector.load %arg3[%c0_5, %c0_6, %c0_7] : memref<1x64x64xbf16, #tpu.memory_space<vmem>>, vector<1x64x64xbf16>
    %5 = vector.shape_cast %4 : vector<1x64x64xbf16> to vector<64x64xbf16>
    %c0_8 = arith.constant 0 : index
    %c0_9 = arith.constant 0 : index
    %6 = vector.load %arg4[%c0_8, %c0_9] : memref<32x32xbf16, #tpu.memory_space<vmem>>, vector<32x32xbf16>
    %cst = arith.constant dense<0.000000e+00> : vector<64x32xf32>
    %7 = tpu.matmul %1, %6, %cst {dimension_numbers = #tpu.dot_dimension_numbers<[1], [0], [0], [1], [0, 0, 1, 1], [], []>} : vector<64x32xbf16>, vector<32x32xbf16>, vector<64x32xf32> -> vector<64x32xf32>
    %c0_10 = arith.constant 0 : index
    %c0_11 = arith.constant 0 : index
    %8 = vector.load %arg5[%c0_10, %c0_11] : memref<32x32xbf16, #tpu.memory_space<vmem>>, vector<32x32xbf16>
    %cst_12 = arith.constant dense<0.000000e+00> : vector<64x32xf32>
    %9 = tpu.matmul %1, %8, %cst_12 {dimension_numbers = #tpu.dot_dimension_numbers<[1], [0], [0], [1], [0, 0, 1, 1], [], []>} : vector<64x32xbf16>, vector<32x32xbf16>, vector<64x32xf32> -> vector<64x32xf32>
    %10 = arith.truncf %7 : vector<64x32xf32> to vector<64x32xbf16>
    %cst_13 = arith.constant dense<0.000000e+00> : vector<64x32xf32>
    %11 = tpu.matmul %3, %10, %cst_13 {dimension_numbers = #tpu.dot_dimension_numbers<[1], [0], [0], [1], [0, 0, 1, 1], [], []>} : vector<64x64xbf16>, vector<64x32xbf16>, vector<64x32xf32> -> vector<64x32xf32>
    %cst_14 = arith.constant 0.000000e+00 : f32
    %12 = vector.broadcast %cst_14 : f32 to vector<64x32xf32>
    %13 = arith.maximumf %11, %12 : vector<64x32xf32>
    %14 = arith.truncf %9 : vector<64x32xf32> to vector<64x32xbf16>
    %cst_15 = arith.constant dense<0.000000e+00> : vector<64x32xf32>
    %15 = tpu.matmul %5, %14, %cst_15 {dimension_numbers = #tpu.dot_dimension_numbers<[1], [0], [0], [1], [0, 0, 1, 1], [], []>} : vector<64x64xbf16>, vector<64x32xbf16>, vector<64x32xf32> -> vector<64x32xf32>
    %cst_16 = arith.constant 0.000000e+00 : f32
    %16 = vector.broadcast %cst_16 : f32 to vector<64x32xf32>
    %17 = arith.maximumf %15, %16 : vector<64x32xf32>
    %18 = arith.truncf %17 : vector<64x32xf32> to vector<64x32xbf16>
    %c0_17 = arith.constant 0 : index
    %c0_18 = arith.constant 0 : index
    %19 = vector.load %arg7[%c0_17, %c0_18] : memref<32x128xbf16, #tpu.memory_space<vmem>>, vector<32x128xbf16>
    %cst_19 = arith.constant dense<0.000000e+00> : vector<64x128xf32>
    %20 = tpu.matmul %18, %19, %cst_19 {dimension_numbers = #tpu.dot_dimension_numbers<[1], [0], [0], [1], [0, 0, 1, 1], [], []>} : vector<64x32xbf16>, vector<32x128xbf16>, vector<64x128xf32> -> vector<64x128xf32>
    %21 = vector.extract_strided_slice %20 {offsets = [0, 0], sizes = [64, 32], strides = [1, 1]} : vector<64x128xf32> to vector<64x32xf32>
    %22 = arith.truncf %13 : vector<64x32xf32> to vector<64x32xbf16>
    %cst_20 = arith.constant dense<0.000000e+00> : vector<64x32xf32>
    %23 = tpu.matmul %3, %22, %cst_20 {dimension_numbers = #tpu.dot_dimension_numbers<[1], [0], [0], [1], [0, 0, 1, 1], [], []>} : vector<64x64xbf16>, vector<64x32xbf16>, vector<64x32xf32> -> vector<64x32xf32>
    %24 = arith.truncf %23 : vector<64x32xf32> to vector<64x32xbf16>
    %c0_21 = arith.constant 0 : index
    %c0_22 = arith.constant 0 : index
    %c0_23 = arith.constant 0 : index
    %25 = vector.load %arg6[%c0_21, %c0_22, %c0_23] : memref<4x32x32xbf16, #tpu.memory_space<vmem>>, vector<1x32x32xbf16>
    %26 = vector.shape_cast %25 : vector<1x32x32xbf16> to vector<32x32xbf16>
    %cst_24 = arith.constant dense<0.000000e+00> : vector<64x32xf32>
    %27 = tpu.matmul %24, %26, %cst_24 {dimension_numbers = #tpu.dot_dimension_numbers<[1], [0], [0], [1], [0, 0, 1, 1], [], []>} : vector<64x32xbf16>, vector<32x32xbf16>, vector<64x32xf32> -> vector<64x32xf32>
    %28 = arith.addf %27, %21 : vector<64x32xf32>
    %cst_25 = arith.constant 0.000000e+00 : f32
    %29 = vector.broadcast %cst_25 : f32 to vector<64x32xf32>
    %30 = arith.maximumf %28, %29 : vector<64x32xf32>
    %31 = vector.extract_strided_slice %20 {offsets = [0, 32], sizes = [64, 32], strides = [1, 1]} : vector<64x128xf32> to vector<64x32xf32>
    %32 = arith.truncf %30 : vector<64x32xf32> to vector<64x32xbf16>
    %cst_26 = arith.constant dense<0.000000e+00> : vector<64x32xf32>
    %33 = tpu.matmul %3, %32, %cst_26 {dimension_numbers = #tpu.dot_dimension_numbers<[1], [0], [0], [1], [0, 0, 1, 1], [], []>} : vector<64x64xbf16>, vector<64x32xbf16>, vector<64x32xf32> -> vector<64x32xf32>
    %34 = arith.truncf %33 : vector<64x32xf32> to vector<64x32xbf16>
    %c1 = arith.constant 1 : index
    %c0_27 = arith.constant 0 : index
    %c0_28 = arith.constant 0 : index
    %35 = vector.load %arg6[%c1, %c0_27, %c0_28] : memref<4x32x32xbf16, #tpu.memory_space<vmem>>, vector<1x32x32xbf16>
    %36 = vector.shape_cast %35 : vector<1x32x32xbf16> to vector<32x32xbf16>
    %cst_29 = arith.constant dense<0.000000e+00> : vector<64x32xf32>
    %37 = tpu.matmul %34, %36, %cst_29 {dimension_numbers = #tpu.dot_dimension_numbers<[1], [0], [0], [1], [0, 0, 1, 1], [], []>} : vector<64x32xbf16>, vector<32x32xbf16>, vector<64x32xf32> -> vector<64x32xf32>
    %38 = arith.addf %37, %31 : vector<64x32xf32>
    %cst_30 = arith.constant 0.000000e+00 : f32
    %39 = vector.broadcast %cst_30 : f32 to vector<64x32xf32>
    %40 = arith.maximumf %38, %39 : vector<64x32xf32>
    %41 = vector.extract_strided_slice %20 {offsets = [0, 64], sizes = [64, 32], strides = [1, 1]} : vector<64x128xf32> to vector<64x32xf32>
    %42 = arith.truncf %40 : vector<64x32xf32> to vector<64x32xbf16>
    %cst_31 = arith.constant dense<0.000000e+00> : vector<64x32xf32>
    %43 = tpu.matmul %3, %42, %cst_31 {dimension_numbers = #tpu.dot_dimension_numbers<[1], [0], [0], [1], [0, 0, 1, 1], [], []>} : vector<64x64xbf16>, vector<64x32xbf16>, vector<64x32xf32> -> vector<64x32xf32>
    %44 = arith.truncf %43 : vector<64x32xf32> to vector<64x32xbf16>
    %c2 = arith.constant 2 : index
    %c0_32 = arith.constant 0 : index
    %c0_33 = arith.constant 0 : index
    %45 = vector.load %arg6[%c2, %c0_32, %c0_33] : memref<4x32x32xbf16, #tpu.memory_space<vmem>>, vector<1x32x32xbf16>
    %46 = vector.shape_cast %45 : vector<1x32x32xbf16> to vector<32x32xbf16>
    %cst_34 = arith.constant dense<0.000000e+00> : vector<64x32xf32>
    %47 = tpu.matmul %44, %46, %cst_34 {dimension_numbers = #tpu.dot_dimension_numbers<[1], [0], [0], [1], [0, 0, 1, 1], [], []>} : vector<64x32xbf16>, vector<32x32xbf16>, vector<64x32xf32> -> vector<64x32xf32>
    %48 = arith.addf %47, %41 : vector<64x32xf32>
    %cst_35 = arith.constant 0.000000e+00 : f32
    %49 = vector.broadcast %cst_35 : f32 to vector<64x32xf32>
    %50 = arith.maximumf %48, %49 : vector<64x32xf32>
    %51 = vector.extract_strided_slice %20 {offsets = [0, 96], sizes = [64, 32], strides = [1, 1]} : vector<64x128xf32> to vector<64x32xf32>
    %52 = arith.truncf %50 : vector<64x32xf32> to vector<64x32xbf16>
    %cst_36 = arith.constant dense<0.000000e+00> : vector<64x32xf32>
    %53 = tpu.matmul %3, %52, %cst_36 {dimension_numbers = #tpu.dot_dimension_numbers<[1], [0], [0], [1], [0, 0, 1, 1], [], []>} : vector<64x64xbf16>, vector<64x32xbf16>, vector<64x32xf32> -> vector<64x32xf32>
    %54 = arith.truncf %53 : vector<64x32xf32> to vector<64x32xbf16>
    %c3 = arith.constant 3 : index
    %c0_37 = arith.constant 0 : index
    %c0_38 = arith.constant 0 : index
    %55 = vector.load %arg6[%c3, %c0_37, %c0_38] : memref<4x32x32xbf16, #tpu.memory_space<vmem>>, vector<1x32x32xbf16>
    %56 = vector.shape_cast %55 : vector<1x32x32xbf16> to vector<32x32xbf16>
    %cst_39 = arith.constant dense<0.000000e+00> : vector<64x32xf32>
    %57 = tpu.matmul %54, %56, %cst_39 {dimension_numbers = #tpu.dot_dimension_numbers<[1], [0], [0], [1], [0, 0, 1, 1], [], []>} : vector<64x32xbf16>, vector<32x32xbf16>, vector<64x32xf32> -> vector<64x32xf32>
    %58 = arith.addf %57, %51 : vector<64x32xf32>
    %cst_40 = arith.constant 0.000000e+00 : f32
    %59 = vector.broadcast %cst_40 : f32 to vector<64x32xf32>
    %60 = arith.maximumf %58, %59 : vector<64x32xf32>
    %61 = arith.truncf %60 : vector<64x32xf32> to vector<64x32xbf16>
    %c0_41 = arith.constant 0 : index
    %c0_42 = arith.constant 0 : index
    %62 = vector.load %arg8[%c0_41, %c0_42] : memref<32x8xbf16, #tpu.memory_space<vmem>>, vector<32x8xbf16>
    %cst_43 = arith.constant dense<0.000000e+00> : vector<64x8xf32>
    %63 = tpu.matmul %61, %62, %cst_43 {dimension_numbers = #tpu.dot_dimension_numbers<[1], [0], [0], [1], [0, 0, 1, 1], [], []>} : vector<64x32xbf16>, vector<32x8xbf16>, vector<64x8xf32> -> vector<64x8xf32>
    %c0_44 = arith.constant 0 : index
    %c0_45 = arith.constant 0 : index
    %64 = vector.load %arg9[%c0_44, %c0_45] : memref<1x8xf32, #tpu.memory_space<vmem>>, vector<1x8xf32>
    %65 = vector.broadcast %64 : vector<1x8xf32> to vector<64x8xf32>
    %66 = arith.addf %63, %65 : vector<64x8xf32>
    %cst_46 = arith.constant dense<0xFF800000> : vector<64xf32>
    %67 = vector.multi_reduction <maximumf>, %66, %cst_46 [1] : vector<64x8xf32> to vector<64xf32>
    %68 = vector.shape_cast %67 : vector<64xf32> to vector<64x1xf32>
    %69 = vector.broadcast %68 : vector<64x1xf32> to vector<64x8xf32>
    %70 = arith.subf %66, %69 : vector<64x8xf32>
    %71 = math.exp %70 : vector<64x8xf32>
    %cst_47 = arith.constant dense<0.000000e+00> : vector<64xf32>
    %72 = vector.multi_reduction <add>, %71, %cst_47 [1] : vector<64x8xf32> to vector<64xf32>
    %73 = vector.shape_cast %72 : vector<64xf32> to vector<64x1xf32>
    %74 = math.log %73 : vector<64x1xf32>
    %75 = arith.addf %74, %68 : vector<64x1xf32>
    %76 = vector.broadcast %75 : vector<64x1xf32> to vector<64x8xf32>
    %77 = arith.subf %66, %76 : vector<64x8xf32>
    %c0_48 = arith.constant 0 : index
    %c0_49 = arith.constant 0 : index
    %c0_50 = arith.constant 0 : index
    %78 = vector.load %arg10[%c0_48, %c0_49, %c0_50] : memref<1x64x8xf32, #tpu.memory_space<vmem>>, vector<1x64x8xf32>
    %79 = vector.shape_cast %78 : vector<1x64x8xf32> to vector<64x8xf32>
    %80 = vector.shape_cast %77 : vector<64x8xf32> to vector<1x64x8xf32>
    tpu.vector_store %arg10[%c0_48, %c0_49, %c0_50], %80 {strides = array<i32>} : memref<1x64x8xf32, #tpu.memory_space<vmem>>, vector<1x64x8xf32>,
    return
  }
  func.func @transform_0(%arg0: i32) -> (i32, i32, i32) {
    %c0_i32 = arith.constant 0 : i32
    %c0_i32_0 = arith.constant 0 : i32
    %c0_i32_1 = arith.constant 0 : i32
    return %arg0, %c0_i32, %c0_i32_0 : i32, i32, i32
  }
  func.func @transform_1(%arg0: i32) -> (i32, i32, i32) {
    %c0_i32 = arith.constant 0 : i32
    %c0_i32_0 = arith.constant 0 : i32
    %c0_i32_1 = arith.constant 0 : i32
    return %arg0, %c0_i32, %c0_i32_0 : i32, i32, i32
  }
  func.func @transform_2(%arg0: i32) -> (i32, i32, i32) {
    %c0_i32 = arith.constant 0 : i32
    %c0_i32_0 = arith.constant 0 : i32
    %c0_i32_1 = arith.constant 0 : i32
    return %arg0, %c0_i32, %c0_i32_0 : i32, i32, i32
  }
  func.func @transform_3(%arg0: i32) -> (i32, i32) {
    %c0_i32 = arith.constant 0 : i32
    %c0_i32_0 = arith.constant 0 : i32
    %c0_i32_1 = arith.constant 0 : i32
    return %c0_i32, %c0_i32_0 : i32, i32
  }
  func.func @transform_4(%arg0: i32) -> (i32, i32) {
    %c0_i32 = arith.constant 0 : i32
    %c0_i32_0 = arith.constant 0 : i32
    %c0_i32_1 = arith.constant 0 : i32
    return %c0_i32, %c0_i32_0 : i32, i32
  }
  func.func @transform_5(%arg0: i32) -> (i32, i32, i32) {
    %c0_i32 = arith.constant 0 : i32
    %c0_i32_0 = arith.constant 0 : i32
    %c0_i32_1 = arith.constant 0 : i32
    %c0_i32_2 = arith.constant 0 : i32
    return %c0_i32, %c0_i32_0, %c0_i32_1 : i32, i32, i32
  }
  func.func @transform_6(%arg0: i32) -> (i32, i32) {
    %c0_i32 = arith.constant 0 : i32
    %c0_i32_0 = arith.constant 0 : i32
    %c0_i32_1 = arith.constant 0 : i32
    return %c0_i32, %c0_i32_0 : i32, i32
  }
  func.func @transform_7(%arg0: i32) -> (i32, i32) {
    %c0_i32 = arith.constant 0 : i32
    %c0_i32_0 = arith.constant 0 : i32
    %c0_i32_1 = arith.constant 0 : i32
    return %c0_i32, %c0_i32_0 : i32, i32
  }
  func.func @transform_8(%arg0: i32) -> (i32, i32) {
    %c0_i32 = arith.constant 0 : i32
    %c0_i32_0 = arith.constant 0 : i32
    %c0_i32_1 = arith.constant 0 : i32
    return %c0_i32, %c0_i32_0 : i32, i32
  }
  func.func @transform_9(%arg0: i32) -> (i32, i32, i32) {
    %c0_i32 = arith.constant 0 : i32
    %c0_i32_0 = arith.constant 0 : i32
    %c0_i32_1 = arith.constant 0 : i32
    return %arg0, %c0_i32, %c0_i32_0 : i32, i32, i32
  }
}

</mosaic_0001>

<llo_original>
// kernel: gcnii_forward.1
$region0: #{gcnii_forward.1}
  #allocation0 [shape = 'u32[]', space=smem, size = 0x4, offset = 0x4, fixed_abs, tag = 'smem constant byte address 0x4 - core index']
  #allocation1 [shape = 'u32[144,128]{1,0:T(1,128)}', space=vmem, size = 0x12000, scoped, tag = 'internal scratch']
  %s0 = inlined_call_operand.vmem [shape: bf16[4,64,32], index: 0, kind: input, shape index: {}]
  %s1 = inlined_call_operand.vmem [shape: bf16[4,64,64], index: 1, kind: input, shape index: {}]
  %s2 = inlined_call_operand.vmem [shape: bf16[4,64,64], index: 2, kind: input, shape index: {}]
  %s3 = inlined_call_operand.vmem [shape: bf16[32,32], index: 3, kind: input, shape index: {}]
  %s4 = inlined_call_operand.vmem [shape: bf16[32,32], index: 4, kind: input, shape index: {}]
  %s5 = inlined_call_operand.vmem [shape: bf16[4,32,32], index: 5, kind: input, shape index: {}]
  %s6 = inlined_call_operand.vmem [shape: bf16[32,128], index: 6, kind: input, shape index: {}]
  %s7 = inlined_call_operand.vmem [shape: bf16[32,8], index: 7, kind: input, shape index: {}]
  %s8 = inlined_call_operand.vmem [shape: f32[1,8], index: 8, kind: input, shape index: {}]
  %s9 = inlined_call_operand.vmem [shape: f32[4,64,8], index: 9, kind: output, shape index: {}]
  %s10 = sld [smem:[#allocation0]]
  $region69: #{gcnii_forward.1} parent=0
    _
  %s12 = ssub.s32 1, %s10
  %s13 = scalar_select 0, %s12, %s10
  loop: start=0, step=1, limit=6
  $region2: #{gcnii_forward.1} parent=0 // loop_pre_header
    _
  $region3: #{gcnii_forward.1} parent=0 // loop_header
    %s15 = sphi 0, %s19
    %p16 = scmp.ge.s32.totalorder %s15, 6
    %s25 = sphi 0, %s27
    %s28 = sphi 0, %s25
    %s29 = sphi 0, %s28
    %s45 = sphi 0, %s29
    %s51 = sphi 0, %s53
    %s54 = sphi 0, %s51
    %s55 = sphi 0, %s54
    %s71 = sphi 0, %s55
    %s77 = sphi 0, %s79
    %s80 = sphi 0, %s77
    %s81 = sphi 0, %s80
    %s97 = sphi 0, %s81
    %s101 = sphi 0, %s101
    %s103 = sphi 0, %s101
    %s104 = sphi 0, %s103
    %s118 = sphi 0, %s104
    %s122 = sphi 0, %s122
    %s124 = sphi 0, %s122
    %s125 = sphi 0, %s124
    %s139 = sphi 0, %s125
    %s143 = sphi 0, %s143
    %s145 = sphi 0, %s143
    %s146 = sphi 0, %s145
    %s160 = sphi 0, %s146
    %s164 = sphi 0, %s164
    %s166 = sphi 0, %s164
    %s167 = sphi 0, %s166
    %s181 = sphi 0, %s167
    %s185 = sphi 0, %s185
    %s187 = sphi 0, %s185
    %s188 = sphi 0, %s187
    %s202 = sphi 0, %s188
    %s206 = sphi 0, %s206
    %s208 = sphi 0, %s206
    %s209 = sphi 0, %s208
    %s223 = sphi 0, %s209
    %s229 = sphi 0, %s231
    %s232 = sphi 0, %s229
    %s233 = sphi 0, %s232
    %s249 = sphi 0, %s233
  $region4: #{gcnii_forward.1} parent=0 // loop_header_branch
    %18 = sbr.rel (%p16) target = $region8
  $region5: #{gcnii_forward.1} parent=0 // loop_body
    %s20 = ssub.s32 %s15, 1
    %s21 = ssub.s32 %s15, 2
    %s22 = sadd.s32 %s15, 1
    %s23 = ssub.s32 %s15, %s22
    %p24 = scmp.eq.s32.totalorder %s23, 0
    %s26 = sadd.s32 %s25, 1
    %s27 = scalar_select %p24, %s25, %s26
    %p30 = pneg %p24
    %p31 = scmp.eq.s32.totalorder %s15, 3
    %p32 = por %p30, %p31
    %p33 = scmp.ne.s32.totalorder %s25, %s28
    %p34 = scmp.eq.s32.totalorder %s15, 0
    %p35 = por %p33, %p34
    %p36 = scmp.ne.s32.totalorder %s25, %s28
    %p37 = scmp.eq.s32.totalorder %s20, 3
    %p38 = por %p36, %p37
    %p39 = scmp.ne.s32.totalorder %s28, %s29
    %p40 = scmp.eq.s32.totalorder %s20, 0
    %p41 = por %p39, %p40
    %p42 = scmp.ne.s32.totalorder %s28, %s29
    %p43 = scmp.eq.s32.totalorder %s21, 3
    %p44 = por %p42, %p43
    %p46 = scmp.ne.s32.totalorder %s29, %s45
    %p47 = scmp.eq.s32.totalorder %s21, 0
    %p48 = por %p46, %p47
    %s49 = ssub.s32 %s15, %s22
    %p50 = scmp.eq.s32.totalorder %s49, 0
    %s52 = sadd.s32 %s51, 1
    %s53 = scalar_select %p50, %s51, %s52
    %p56 = pneg %p50
    %p57 = scmp.eq.s32.totalorder %s15, 3
    %p58 = por %p56, %p57
    %p59 = scmp.ne.s32.totalorder %s51, %s54
    %p60 = scmp.eq.s32.totalorder %s15, 0
    %p61 = por %p59, %p60
    %p62 = scmp.ne.s32.totalorder %s51, %s54
    %p63 = scmp.eq.s32.totalorder %s20, 3
    %p64 = por %p62, %p63
    %p65 = scmp.ne.s32.totalorder %s54, %s55
    %p66 = scmp.eq.s32.totalorder %s20, 0
    %p67 = por %p65, %p66
    %p68 = scmp.ne.s32.totalorder %s54, %s55
    %p69 = scmp.eq.s32.totalorder %s21, 3
    %p70 = por %p68, %p69
    %p72 = scmp.ne.s32.totalorder %s55, %s71
    %p73 = scmp.eq.s32.totalorder %s21, 0
    %p74 = por %p72, %p73
    %s75 = ssub.s32 %s15, %s22
    %p76 = scmp.eq.s32.totalorder %s75, 0
    %s78 = sadd.s32 %s77, 1
    %s79 = scalar_select %p76, %s77, %s78
    %p82 = pneg %p76
    %p83 = scmp.eq.s32.totalorder %s15, 3
    %p84 = por %p82, %p83
    %p85 = scmp.ne.s32.totalorder %s77, %s80
    %p86 = scmp.eq.s32.totalorder %s15, 0
    %p87 = por %p85, %p86
    %p88 = scmp.ne.s32.totalorder %s77, %s80
    %p89 = scmp.eq.s32.totalorder %s20, 3
    %p90 = por %p88, %p89
    %p91 = scmp.ne.s32.totalorder %s80, %s81
    %p92 = scmp.eq.s32.totalorder %s20, 0
    %p93 = por %p91, %p92
    %p94 = scmp.ne.s32.totalorder %s80, %s81
    %p95 = scmp.eq.s32.totalorder %s21, 3
    %p96 = por %p94, %p95
    %p98 = scmp.ne.s32.totalorder %s81, %s97
    %p99 = scmp.eq.s32.totalorder %s21, 0
    %p100 = por %p98, %p99
    %s102 = sadd.s32 %s101, 1
    %p105 = scmp.eq.s32.totalorder %s15, 3
    %p106 = scmp.ne.s32.totalorder %s101, %s103
    %p107 = scmp.eq.s32.totalorder %s15, 0
    %p108 = por %p106, %p107
    %p109 = scmp.ne.s32.totalorder %s101, %s103
    %p110 = scmp.eq.s32.totalorder %s20, 3
    %p111 = por %p109, %p110
    %p112 = scmp.ne.s32.totalorder %s103, %s104
    %p113 = scmp.eq.s32.totalorder %s20, 0
    %p114 = por %p112, %p113
    %p115 = scmp.ne.s32.totalorder %s103, %s104
    %p116 = scmp.eq.s32.totalorder %s21, 3
    %p117 = por %p115, %p116
    %p119 = scmp.ne.s32.totalorder %s104, %s118
    %p120 = scmp.eq.s32.totalorder %s21, 0
    %p121 = por %p119, %p120
    %s123 = sadd.s32 %s122, 1
    %p126 = scmp.eq.s32.totalorder %s15, 3
    %p127 = scmp.ne.s32.totalorder %s122, %s124
    %p128 = scmp.eq.s32.totalorder %s15, 0
    %p129 = por %p127, %p128
    %p130 = scmp.ne.s32.totalorder %s122, %s124
    %p131 = scmp.eq.s32.totalorder %s20, 3
    %p132 = por %p130, %p131
    %p133 = scmp.ne.s32.totalorder %s124, %s125
    %p134 = scmp.eq.s32.totalorder %s20, 0
    %p135 = por %p133, %p134
    %p136 = scmp.ne.s32.totalorder %s124, %s125
    %p137 = scmp.eq.s32.totalorder %s21, 3
    %p138 = por %p136, %p137
    %p140 = scmp.ne.s32.totalorder %s125, %s139
    %p141 = scmp.eq.s32.totalorder %s21, 0
    %p142 = por %p140, %p141
    %s144 = sadd.s32 %s143, 1
    %p147 = scmp.eq.s32.totalorder %s15, 3
    %p148 = scmp.ne.s32.totalorder %s143, %s145
    %p149 = scmp.eq.s32.totalorder %s15, 0
    %p150 = por %p148, %p149
    %p151 = scmp.ne.s32.totalorder %s143, %s145
    %p152 = scmp.eq.s32.totalorder %s20, 3
    %p153 = por %p151, %p152
    %p154 = scmp.ne.s32.totalorder %s145, %s146
    %p155 = scmp.eq.s32.totalorder %s20, 0
    %p156 = por %p154, %p155
    %p157 = scmp.ne.s32.totalorder %s145, %s146
    %p158 = scmp.eq.s32.totalorder %s21, 3
    %p159 = por %p157, %p158
    %p161 = scmp.ne.s32.totalorder %s146, %s160
    %p162 = scmp.eq.s32.totalorder %s21, 0
    %p163 = por %p161, %p162
    %s165 = sadd.s32 %s164, 1
    %p168 = scmp.eq.s32.totalorder %s15, 3
    %p169 = scmp.ne.s32.totalorder %s164, %s166
    %p170 = scmp.eq.s32.totalorder %s15, 0
    %p171 = por %p169, %p170
    %p172 = scmp.ne.s32.totalorder %s164, %s166
    %p173 = scmp.eq.s32.totalorder %s20, 3
    %p174 = por %p172, %p173
    %p175 = scmp.ne.s32.totalorder %s166, %s167
    %p176 = scmp.eq.s32.totalorder %s20, 0
    %p177 = por %p175, %p176
    %p178 = scmp.ne.s32.totalorder %s166, %s167
    %p179 = scmp.eq.s32.totalorder %s21, 3
    %p180 = por %p178, %p179
    %p182 = scmp.ne.s32.totalorder %s167, %s181
    %p183 = scmp.eq.s32.totalorder %s21, 0
    %p184 = por %p182, %p183
    %s186 = sadd.s32 %s185, 1
    %p189 = scmp.eq.s32.totalorder %s15, 3
    %p190 = scmp.ne.s32.totalorder %s185, %s187
    %p191 = scmp.eq.s32.totalorder %s15, 0
    %p192 = por %p190, %p191
    %p193 = scmp.ne.s32.totalorder %s185, %s187
    %p194 = scmp.eq.s32.totalorder %s20, 3
    %p195 = por %p193, %p194
    %p196 = scmp.ne.s32.totalorder %s187, %s188
    %p197 = scmp.eq.s32.totalorder %s20, 0
    %p198 = por %p196, %p197
    %p199 = scmp.ne.s32.totalorder %s187, %s188
    %p200 = scmp.eq.s32.totalorder %s21, 3
    %p201 = por %p199, %p200
    %p203 = scmp.ne.s32.totalorder %s188, %s202
    %p204 = scmp.eq.s32.totalorder %s21, 0
    %p205 = por %p203, %p204
    %s207 = sadd.s32 %s206, 1
    %p210 = scmp.eq.s32.totalorder %s15, 3
    %p211 = scmp.ne.s32.totalorder %s206, %s208
    %p212 = scmp.eq.s32.totalorder %s15, 0
    %p213 = por %p211, %p212
    %p214 = scmp.ne.s32.totalorder %s206, %s208
    %p215 = scmp.eq.s32.totalorder %s20, 3
    %p216 = por %p214, %p215
    %p217 = scmp.ne.s32.totalorder %s208, %s209
    %p218 = scmp.eq.s32.totalorder %s20, 0
    %p219 = por %p217, %p218
    %p220 = scmp.ne.s32.totalorder %s208, %s209
    %p221 = scmp.eq.s32.totalorder %s21, 3
    %p222 = por %p220, %p221
    %p224 = scmp.ne.s32.totalorder %s209, %s223
    %p225 = scmp.eq.s32.totalorder %s21, 0
    %p226 = por %p224, %p225
    %s227 = ssub.s32 %s15, %s22
    %p228 = scmp.eq.s32.totalorder %s227, 0
    %s230 = sadd.s32 %s229, 1
    %s231 = scalar_select %p228, %s229, %s230
    %p234 = pneg %p228
    %p235 = scmp.eq.s32.totalorder %s15, 3
    %p236 = por %p234, %p235
    %p237 = scmp.ne.s32.totalorder %s229, %s232
    %p238 = scmp.eq.s32.totalorder %s15, 0
    %p239 = por %p237, %p238
    %p240 = scmp.ne.s32.totalorder %s229, %s232
    %p241 = scmp.eq.s32.totalorder %s20, 3
    %p242 = por %p240, %p241
    %p243 = scmp.ne.s32.totalorder %s232, %s233
    %p244 = scmp.eq.s32.totalorder %s20, 0
    %p245 = por %p243, %p244
    %p246 = scmp.ne.s32.totalorder %s232, %s233
    %p247 = scmp.eq.s32.totalorder %s21, 3
    %p248 = por %p246, %p247
    %p250 = scmp.ne.s32.totalorder %s233, %s249
    %p251 = scmp.eq.s32.totalorder %s21, 0
    %p252 = por %p250, %p251
    %p253 = scmp.le.s32.totalorder 1, %s15
    %p254 = scmp.lt.s32.totalorder %s15, 5
    %p255 = pnand %p253, %p254
    %p256 = pneg %p255
    // Predicated region
    $region9: #{gcnii_forward.1} parent=5 // pred_check
      _
    $region10: #{gcnii_forward.1} parent=5 // pred_check_branch
      %258 = sbr.rel (%p255) target = $region12
    $region11: #{gcnii_forward.1} parent=5 // pred_region
      %s259 = ssub.s32 %s15, 1
      // Predicated region
      $region13: #{gcnii_forward.1} parent=11 // pred_check
        %p260 = pneg %p114
      $region14: #{gcnii_forward.1} parent=11 // pred_check_branch
        %262 = sbr.rel (%p260) target = $region16
      $region15: #{gcnii_forward.1} parent=11 // pred_region
        _
      $region16: #{gcnii_forward.1} parent=11 // pred_fallthru
        _
      // Predicated region
      $region17: #{gcnii_forward.1} parent=11 // pred_check
        %p263 = pneg %p135
      $region18: #{gcnii_forward.1} parent=11 // pred_check_branch
        %265 = sbr.rel (%p263) target = $region20
      $region19: #{gcnii_forward.1} parent=11 // pred_region
        _
      $region20: #{gcnii_forward.1} parent=11 // pred_fallthru
        _
      // Predicated region
      $region21: #{gcnii_forward.1} parent=11 // pred_check
        %p266 = pneg %p156
      $region22: #{gcnii_forward.1} parent=11 // pred_check_branch
        %268 = sbr.rel (%p266) target = $region24
      $region23: #{gcnii_forward.1} parent=11 // pred_region
        _
      $region24: #{gcnii_forward.1} parent=11 // pred_fallthru
        _
      // Predicated region
      $region25: #{gcnii_forward.1} parent=11 // pred_check
        %p269 = pneg %p177
      $region26: #{gcnii_forward.1} parent=11 // pred_check_branch
        %271 = sbr.rel (%p269) target = $region28
      $region27: #{gcnii_forward.1} parent=11 // pred_region
        _
      $region28: #{gcnii_forward.1} parent=11 // pred_fallthru
        _
      // Predicated region
      $region29: #{gcnii_forward.1} parent=11 // pred_check
        %p272 = pneg %p198
      $region30: #{gcnii_forward.1} parent=11 // pred_check_branch
        %274 = sbr.rel (%p272) target = $region32
      $region31: #{gcnii_forward.1} parent=11 // pred_region
        _
      $region32: #{gcnii_forward.1} parent=11 // pred_fallthru
        _
      // Predicated region
      $region33: #{gcnii_forward.1} parent=11 // pred_check
        %p275 = pneg %p219
      $region34: #{gcnii_forward.1} parent=11 // pred_check_branch
        %277 = sbr.rel (%p275) target = $region36
      $region35: #{gcnii_forward.1} parent=11 // pred_region
        _
      $region36: #{gcnii_forward.1} parent=11 // pred_fallthru
        _
    $region12: #{gcnii_forward.1} parent=5 // pred_fallthru
      _
    %p278 = scmp.lt.s32.totalorder %s15, 4
    // Predicated region
    $region37: #{gcnii_forward.1} parent=5 // pred_check
      %p279 = pneg %p278
    $region38: #{gcnii_forward.1} parent=5 // pred_check_branch
      %281 = sbr.rel (%p279) target = $region40
    $region39: #{gcnii_forward.1} parent=5 // pred_region
      // Predicated region
      $region41: #{gcnii_forward.1} parent=39 // pred_check
        %p282 = pneg %p35
      $region42: #{gcnii_forward.1} parent=39 // pred_check_branch
        %284 = sbr.rel (%p282) target = $region44
      $region43: #{gcnii_forward.1} parent=39 // pred_region
        %p285 = scmp.lt.s32.totalorder %s15, 3
        %s286 = scalar_select %p285, %s15, 3
        %s287 = smul.addr %s286, 8
        %s288 = smul.addr %s287, 4
        %s289 = scalar_lea.vmem %s0, %s288
      $region44: #{gcnii_forward.1} parent=39 // pred_fallthru
        _
      // Predicated region
      $region45: #{gcnii_forward.1} parent=39 // pred_check
        %p290 = pneg %p61
      $region46: #{gcnii_forward.1} parent=39 // pred_check_branch
        %292 = sbr.rel (%p290) target = $region48
      $region47: #{gcnii_forward.1} parent=39 // pred_region
        %p293 = scmp.lt.s32.totalorder %s15, 3
        %s294 = scalar_select %p293, %s15, 3
        %s295 = smul.addr %s294, 8
        %s296 = smul.addr %s295, 4
        %s297 = scalar_lea.vmem %s1, %s296
      $region48: #{gcnii_forward.1} parent=39 // pred_fallthru
        _
      // Predicated region
      $region49: #{gcnii_forward.1} parent=39 // pred_check
        %p298 = pneg %p87
      $region50: #{gcnii_forward.1} parent=39 // pred_check_branch
        %300 = sbr.rel (%p298) target = $region52
      $region51: #{gcnii_forward.1} parent=39 // pred_region
        %p301 = scmp.lt.s32.totalorder %s15, 3
        %s302 = scalar_select %p301, %s15, 3
        %s303 = smul.addr %s302, 8
        %s304 = smul.addr %s303, 4
        %s305 = scalar_lea.vmem %s2, %s304
      $region52: #{gcnii_forward.1} parent=39 // pred_fallthru
        _
    $region40: #{gcnii_forward.1} parent=5 // pred_fallthru
      _
    %p306 = scmp.le.s32.totalorder 1, %s15
    %p307 = scmp.lt.s32.totalorder %s15, 5
    %p308 = pnand %p306, %p307
    %p309 = pneg %p308
    // Predicated region
    $region53: #{gcnii_forward.1} parent=5 // pred_check
      _
    $region54: #{gcnii_forward.1} parent=5 // pred_check_branch
      %311 = sbr.rel (%p308) target = $region56
    $region55: #{gcnii_forward.1} parent=5 // pred_region
      %s312 = ssub.s32 %s15, 1
      %p313 = scmp.lt.s32.totalorder %s20, 3
      %s314 = scalar_select %p313, %s20, 3
      %s315 = smul.addr %s314, 8
      %s316 = smul.addr %s315, 4
      %s317 = scalar_lea.vmem %s0, %s316
      %p318 = pneg %p41
      %p319 = pneg %p38
      %p320 = scmp.lt.s32.totalorder %s20, 3
      %s321 = scalar_select %p320, %s20, 3
      %s322 = smul.addr %s321, 8
      %s323 = smul.addr %s322, 4
      %s324 = scalar_lea.vmem %s1, %s323
      %p325 = pneg %p67
      %p326 = pneg %p64
      %p327 = scmp.lt.s32.totalorder %s20, 3
      %s328 = scalar_select %p327, %s20, 3
      %s329 = smul.addr %s328, 8
      %s330 = smul.addr %s329, 4
      %s331 = scalar_lea.vmem %s2, %s330
      %p332 = pneg %p93
      %p333 = pneg %p90
      %p334 = pneg %p114
      %p335 = pneg %p111
      %p336 = pneg %p135
      %p337 = pneg %p132
      %p338 = pneg %p156
      %p339 = pneg %p153
      %p340 = pneg %p177
      %p341 = pneg %p174
      %p342 = pneg %p198
      %p343 = pneg %p195
      %p344 = pneg %p219
      %p345 = pneg %p216
      %p346 = pneg %p245
      %p347 = pneg %p242
      %p348 = scmp.lt.s32.totalorder %s20, 3
      %s349 = scalar_select %p348, %s20, 3
      %s350 = smul.addr %s349, 8
      %s351 = smul.addr %s350, 8
      %s352 = scalar_lea.vmem %s9, %s351
      %p353 = scmp.lt.s32.totalorder %s20, 3
      %s354 = scalar_select %p353, %s20, 3
      %s355 = smul.addr %s354, 8
      %s356 = smul.addr %s355, 4
      %s357 = scalar_lea.vmem %s0, %s356
      %p358 = scmp.lt.s32.totalorder %s20, 3
      %s359 = scalar_select %p358, %s20, 3
      %s360 = smul.addr %s359, 8
      %s361 = smul.addr %s360, 4
      %s362 = scalar_lea.vmem %s1, %s361
      %p363 = scmp.lt.s32.totalorder %s20, 3
      %s364 = scalar_select %p363, %s20, 3
      %s365 = smul.addr %s364, 8
      %s366 = smul.addr %s365, 4
      %s367 = scalar_lea.vmem %s2, %s366
      %p368 = scmp.lt.s32.totalorder %s20, 3
      %s369 = scalar_select %p368, %s20, 3
      %s370 = smul.addr %s369, 8
      %s371 = smul.addr %s370, 8
      %s372 = scalar_lea.vmem %s9, %s371
      %v374 = vld [vmem:[%s357] sm:$0xf]
      %v375 = vld [vmem:[%s357 + $0x4] sm:$0xf]
      %v376 = vld [vmem:[%s357 + $0x8] sm:$0xf]
      %v377 = vld [vmem:[%s357 + $0xc] sm:$0xf]
      %v378 = vld [vmem:[%s357 + $0x10] sm:$0xf]
      %v379 = vld [vmem:[%s357 + $0x14] sm:$0xf]
      %v380 = vld [vmem:[%s357 + $0x18] sm:$0xf]
      %v381 = vld [vmem:[%s357 + $0x1c] sm:$0xf]
      %v382 = vld [vmem:[%s362] sm:$0xf]
      %v383 = vld [vmem:[%s362 + $0x4] sm:$0xf]
      %v384 = vld [vmem:[%s362 + $0x8] sm:$0xf]
      %v385 = vld [vmem:[%s362 + $0xc] sm:$0xf]
      %v386 = vld [vmem:[%s362 + $0x10] sm:$0xf]
      %v387 = vld [vmem:[%s362 + $0x14] sm:$0xf]
      %v388 = vld [vmem:[%s362 + $0x18] sm:$0xf]
      %v389 = vld [vmem:[%s362 + $0x1c] sm:$0xf]
      %v390 = vld [vmem:[%s367] sm:$0xf]
      %v391 = vld [vmem:[%s367 + $0x4] sm:$0xf]
      %v392 = vld [vmem:[%s367 + $0x8] sm:$0xf]
      %v393 = vld [vmem:[%s367 + $0xc] sm:$0xf]
      %v394 = vld [vmem:[%s367 + $0x10] sm:$0xf]
      %v395 = vld [vmem:[%s367 + $0x14] sm:$0xf]
      %v396 = vld [vmem:[%s367 + $0x18] sm:$0xf]
      %v397 = vld [vmem:[%s367 + $0x1c] sm:$0xf]
      %v398 = vld [vmem:[%s3] sm:$0xf]
      %v399 = vld [vmem:[%s3 + $0x4] sm:$0xf]
      %v400 = vld [vmem:[%s3 + $0x8] sm:$0xf]
      %v401 = vld [vmem:[%s3 + $0xc] sm:$0xf]
      %v410 = vunpack.c.l.b16 %v374
      %v411 = vunpack.c.l.b16 %v375
      %v412 = vunpack.c.l.b16 %v376
      %v413 = vunpack.c.l.b16 %v377
      %v414 = vunpack.c.l.b16 %v378
      %v415 = vunpack.c.l.b16 %v379
      %v416 = vunpack.c.l.b16 %v380
      %v417 = vunpack.c.l.b16 %v381
      %v418 = vpack.c.b16 %v411, %v410
      %v419 = vpack.c.b16 %v413, %v412
      %v420 = vpack.c.b16 %v415, %v414
      %v421 = vpack.c.b16 %v417, %v416
      %v426 = vunpack.c.l.b16 %v398
      %v427 = vunpack.c.l.b16 %v399
      %v428 = vunpack.c.l.b16 %v400
      %v429 = vunpack.c.l.b16 %v401
      %v430 = vpack.c.b16 %v427, %v426
      %v431 = vpack.c.b16 %v429, %v428
      %vm434 = vcmask 261120
      %v436 = vsel %vm434, %v418, 0
      %v439 = vsel %vm434, %v419, 0
      %v442 = vsel %vm434, %v420, 0
      %v445 = vsel %vm434, %v421, 0
      %447 = vmatprep.subr.bf16.mxu0 0
      %448 = vmatpush1.bf16.msra.mxu0 %v430
      %449 = vmatprep.subr.bf16.mxu0 0
      %450 = vmatpush1.bf16.msra.mxu0 %v431
      %451 = vmatprep.subr.bf16.mxu0 0
      %452 = vmatpush1.bf16.msra.mxu0 0
      %453 = vmatprep.subr.bf16.mxu0 0
      %454 = vmatpush1.bf16.msra.mxu0 0
      %455 = vmatprep.subr.bf16.mxu0 0
      %456 = vmatpush1.bf16.msra.mxu0 0
      %457 = vmatprep.subr.bf16.mxu0 0
      %458 = vmatpush1.bf16.msra.mxu0 0
      %459 = vmatprep.subr.bf16.mxu0 0
      %460 = vmatpush1.bf16.msra.mxu0 0
      %461 = vmatprep.subr.bf16.mxu0 0
      %462 = vmatpush1.bf16.msra.mxu0 0
      %463 = vmatprep.subr.bf16.mxu0 0
      %464 = vmatpush1.bf16.msra.mxu0 0
      %465 = vmatprep.subr.bf16.mxu0 0
      %466 = vmatpush1.bf16.msra.mxu0 0
      %467 = vmatprep.subr.bf16.mxu0 0
      %468 = vmatpush1.bf16.msra.mxu0 0
      %469 = vmatprep.subr.bf16.mxu0 0
      %470 = vmatpush1.bf16.msra.mxu0 0
      %471 = vmatprep.subr.bf16.mxu0 0
      %472 = vmatpush1.bf16.msra.mxu0 0
      %473 = vmatprep.subr.bf16.mxu0 0
      %474 = vmatpush1.bf16.msra.mxu0 0
      %475 = vmatprep.subr.bf16.mxu0 0
      %476 = vmatpush1.bf16.msra.mxu0 0
      %477 = vmatprep.subr.bf16.mxu0 0
      %478 = vmatpush1.bf16.msra.mxu0 0
      %479 = vmatprep.mubr.bf16.mxu0 0
      %480 = vmatmul.mubr.bf16.gmra.mrb[0].mxu0 %v436
      %v481 = vpop.f32.mrb[0].mxu0
      %v482 = vadd.f32 0.0, %v481
      %v483 = vpop.f32.mrb[0].mxu0
      %v484 = vpop.f32.mrb[0].mxu0
      %v485 = vadd.f32 0.0, %v484
      %v486 = vpop.f32.mrb[0].mxu0
      %487 = vmatprep.mubr.bf16.mxu0 0
      %488 = vmatmul.mubr.bf16.gmra.mrb[0].mxu0 %v439
      %v489 = vpop.f32.mrb[0].mxu0
      %v490 = vadd.f32 0.0, %v489
      %v491 = vpop.f32.mrb[0].mxu0
      %v492 = vpop.f32.mrb[0].mxu0
      %v493 = vadd.f32 0.0, %v492
      %v494 = vpop.f32.mrb[0].mxu0
      %495 = vmatprep.mubr.bf16.mxu0 0
      %496 = vmatmul.mubr.bf16.gmra.mrb[0].mxu0 %v442
      %v497 = vpop.f32.mrb[0].mxu0
      %v498 = vadd.f32 0.0, %v497
      %v499 = vpop.f32.mrb[0].mxu0
      %v500 = vpop.f32.mrb[0].mxu0
      %v501 = vadd.f32 0.0, %v500
      %v502 = vpop.f32.mrb[0].mxu0
      %503 = vmatprep.mubr.bf16.mxu0 0
      %504 = vmatmul.mubr.bf16.gmra.mrb[0].mxu0 %v445
      %v505 = vpop.f32.mrb[0].mxu0
      %v506 = vadd.f32 0.0, %v505
      %v507 = vpop.f32.mrb[0].mxu0
      %v508 = vpop.f32.mrb[0].mxu0
      %v509 = vadd.f32 0.0, %v508
      %v510 = vpop.f32.mrb[0].mxu0
      %511 = vdwg.mxu0
      %v512 = vld [vmem:[%s4] sm:$0xf]
      %v513 = vld [vmem:[%s4 + $0x4] sm:$0xf]
      %v514 = vld [vmem:[%s4 + $0x8] sm:$0xf]
      %v515 = vld [vmem:[%s4 + $0xc] sm:$0xf]
      %v520 = vunpack.c.l.b16 %v512
      %v521 = vunpack.c.l.b16 %v513
      %v522 = vunpack.c.l.b16 %v514
      %v523 = vunpack.c.l.b16 %v515
      %v524 = vpack.c.b16 %v521, %v520
      %v525 = vpack.c.b16 %v523, %v522
      %528 = vmatprep.subr.bf16.mxu0 0
      %529 = vmatpush1.bf16.msra.mxu0 %v524
      %530 = vmatprep.subr.bf16.mxu0 0
      %531 = vmatpush1.bf16.msra.mxu0 %v525
      %532 = vmatprep.subr.bf16.mxu0 0
      %533 = vmatpush1.bf16.msra.mxu0 0
      %534 = vmatprep.subr.bf16.mxu0 0
      %535 = vmatpush1.bf16.msra.mxu0 0
      %536 = vmatprep.subr.bf16.mxu0 0
      %537 = vmatpush1.bf16.msra.mxu0 0
      %538 = vmatprep.subr.bf16.mxu0 0
      %539 = vmatpush1.bf16.msra.mxu0 0
      %540 = vmatprep.subr.bf16.mxu0 0
      %541 = vmatpush1.bf16.msra.mxu0 0
      %542 = vmatprep.subr.bf16.mxu0 0
      %543 = vmatpush1.bf16.msra.mxu0 0
      %544 = vmatprep.subr.bf16.mxu0 0
      %545 = vmatpush1.bf16.msra.mxu0 0
      %546 = vmatprep.subr.bf16.mxu0 0
      %547 = vmatpush1.bf16.msra.mxu0 0
      %548 = vmatprep.subr.bf16.mxu0 0
      %549 = vmatpush1.bf16.msra.mxu0 0
      %550 = vmatprep.subr.bf16.mxu0 0
      %551 = vmatpush1.bf16.msra.mxu0 0
      %552 = vmatprep.subr.bf16.mxu0 0
      %553 = vmatpush1.bf16.msra.mxu0 0
      %554 = vmatprep.subr.bf16.mxu0 0
      %555 = vmatpush1.bf16.msra.mxu0 0
      %556 = vmatprep.subr.bf16.mxu0 0
      %557 = vmatpush1.bf16.msra.mxu0 0
      %558 = vmatprep.subr.bf16.mxu0 0
      %559 = vmatpush1.bf16.msra.mxu0 0
      %560 = vmatprep.mubr.bf16.mxu0 0
      %561 = vmatmul.mubr.bf16.gmra.mrb[0].mxu0 %v436
      %v562 = vpop.f32.mrb[0].mxu0
      %v563 = vadd.f32 0.0, %v562
      %v564 = vpop.f32.mrb[0].mxu0
      %v565 = vpop.f32.mrb[0].mxu0
      %v566 = vadd.f32 0.0, %v565
      %v567 = vpop.f32.mrb[0].mxu0
      %568 = vmatprep.mubr.bf16.mxu0 0
      %569 = vmatmul.mubr.bf16.gmra.mrb[0].mxu0 %v439
      %v570 = vpop.f32.mrb[0].mxu0
      %v571 = vadd.f32 0.0, %v570
      %v572 = vpop.f32.mrb[0].mxu0
      %v573 = vpop.f32.mrb[0].mxu0
      %v574 = vadd.f32 0.0, %v573
      %v575 = vpop.f32.mrb[0].mxu0
      %576 = vmatprep.mubr.bf16.mxu0 0
      %577 = vmatmul.mubr.bf16.gmra.mrb[0].mxu0 %v442
      %v578 = vpop.f32.mrb[0].mxu0
      %v579 = vadd.f32 0.0, %v578
      %v580 = vpop.f32.mrb[0].mxu0
      %v581 = vpop.f32.mrb[0].mxu0
      %v582 = vadd.f32 0.0, %v581
      %v583 = vpop.f32.mrb[0].mxu0
      %584 = vmatprep.mubr.bf16.mxu0 0
      %585 = vmatmul.mubr.bf16.gmra.mrb[0].mxu0 %v445
      %v586 = vpop.f32.mrb[0].mxu0
      %v587 = vadd.f32 0.0, %v586
      %v588 = vpop.f32.mrb[0].mxu0
      %v589 = vpop.f32.mrb[0].mxu0
      %v590 = vadd.f32 0.0, %v589
      %v591 = vpop.f32.mrb[0].mxu0
      %592 = vdwg.mxu0
      %v593 = vpack.c.bf16 %v485, %v482
      %v594 = vpack.c.bf16 %v493, %v490
      %v595 = vpack.c.bf16 %v501, %v498
      %v596 = vpack.c.bf16 %v509, %v506
      %v605 = vunpack.c.l.b16 %v382
      %v606 = vunpack.c.l.b16 %v383
      %v607 = vunpack.c.l.b16 %v384
      %v608 = vunpack.c.l.b16 %v385
      %v609 = vunpack.c.l.b16 %v386
      %v610 = vunpack.c.l.b16 %v387
      %v611 = vunpack.c.l.b16 %v388
      %v612 = vunpack.c.l.b16 %v389
      %v613 = vpack.c.b16 %v606, %v605
      %v614 = vpack.c.b16 %v608, %v607
      %v615 = vpack.c.b16 %v610, %v609
      %v616 = vpack.c.b16 %v612, %v611
      %vm617 = vcmask 523264
      %v619 = vsel %vm617, %v613, 0
      %v622 = vsel %vm617, %v614, 0
      %v625 = vsel %vm617, %v615, 0
      %v628 = vsel %vm617, %v616, 0
      %630 = vmatprep.subr.bf16.mxu0 0
      %631 = vmatpush1.bf16.msra.mxu0 %v593
      %632 = vmatprep.subr.bf16.mxu0 0
      %633 = vmatpush1.bf16.msra.mxu0 %v594
      %634 = vmatprep.subr.bf16.mxu0 0
      %635 = vmatpush1.bf16.msra.mxu0 %v595
      %636 = vmatprep.subr.bf16.mxu0 0
      %637 = vmatpush1.bf16.msra.mxu0 %v596
      %638 = vmatprep.subr.bf16.mxu0 0
      %639 = vmatpush1.bf16.msra.mxu0 0
      %640 = vmatprep.subr.bf16.mxu0 0
      %641 = vmatpush1.bf16.msra.mxu0 0
      %642 = vmatprep.subr.bf16.mxu0 0
      %643 = vmatpush1.bf16.msra.mxu0 0
      %644 = vmatprep.subr.bf16.mxu0 0
      %645 = vmatpush1.bf16.msra.mxu0 0
      %646 = vmatprep.subr.bf16.mxu0 0
      %647 = vmatpush1.bf16.msra.mxu0 0
      %648 = vmatprep.subr.bf16.mxu0 0
      %649 = vmatpush1.bf16.msra.mxu0 0
      %650 = vmatprep.subr.bf16.mxu0 0
      %651 = vmatpush1.bf16.msra.mxu0 0
      %652 = vmatprep.subr.bf16.mxu0 0
      %653 = vmatpush1.bf16.msra.mxu0 0
      %654 = vmatprep.subr.bf16.mxu0 0
      %655 = vmatpush1.bf16.msra.mxu0 0
      %656 = vmatprep.subr.bf16.mxu0 0
      %657 = vmatpush1.bf16.msra.mxu0 0
      %658 = vmatprep.subr.bf16.mxu0 0
      %659 = vmatpush1.bf16.msra.mxu0 0
      %660 = vmatprep.subr.bf16.mxu0 0
      %661 = vmatpush1.bf16.msra.mxu0 0
      %662 = vmatprep.mubr.bf16.mxu0 0
      %663 = vmatmul.mubr.bf16.gmra.mrb[0].mxu0 %v619
      %v664 = vpop.f32.mrb[0].mxu0
      %v665 = vadd.f32 0.0, %v664
      %v666 = vpop.f32.mrb[0].mxu0
      %v667 = vpop.f32.mrb[0].mxu0
      %v668 = vadd.f32 0.0, %v667
      %v669 = vpop.f32.mrb[0].mxu0
      %670 = vmatprep.mubr.bf16.mxu0 0
      %671 = vmatmul.mubr.bf16.gmra.mrb[0].mxu0 %v622
      %v672 = vpop.f32.mrb[0].mxu0
      %v673 = vadd.f32 0.0, %v672
      %v674 = vpop.f32.mrb[0].mxu0
      %v675 = vpop.f32.mrb[0].mxu0
      %v676 = vadd.f32 0.0, %v675
      %v677 = vpop.f32.mrb[0].mxu0
      %678 = vmatprep.mubr.bf16.mxu0 0
      %679 = vmatmul.mubr.bf16.gmra.mrb[0].mxu0 %v625
      %v680 = vpop.f32.mrb[0].mxu0
      %v681 = vadd.f32 0.0, %v680
      %v682 = vpop.f32.mrb[0].mxu0
      %v683 = vpop.f32.mrb[0].mxu0
      %v684 = vadd.f32 0.0, %v683
      %v685 = vpop.f32.mrb[0].mxu0
      %686 = vmatprep.mubr.bf16.mxu0 0
      %687 = vmatmul.mubr.bf16.gmra.mrb[0].mxu0 %v628
      %v688 = vpop.f32.mrb[0].mxu0
      %v689 = vadd.f32 0.0, %v688
      %v690 = vpop.f32.mrb[0].mxu0
      %v691 = vpop.f32.mrb[0].mxu0
      %v692 = vadd.f32 0.0, %v691
      %v693 = vpop.f32.mrb[0].mxu0
      %694 = vdwg.mxu0
      %v695 = vmax.f32 %v665, 0.0
      %v696 = vmax.f32 %v668, 0.0
      %v697 = vmax.f32 %v673, 0.0
      %v698 = vmax.f32 %v676, 0.0
      %v699 = vmax.f32 %v681, 0.0
      %v700 = vmax.f32 %v684, 0.0
      %v701 = vmax.f32 %v689, 0.0
      %v702 = vmax.f32 %v692, 0.0
      %v703 = vpack.c.bf16 %v566, %v563
      %v704 = vpack.c.bf16 %v574, %v571
      %v705 = vpack.c.bf16 %v582, %v579
      %v706 = vpack.c.bf16 %v590, %v587
      %v715 = vunpack.c.l.b16 %v390
      %v716 = vunpack.c.l.b16 %v391
      %v717 = vunpack.c.l.b16 %v392
      %v718 = vunpack.c.l.b16 %v393
      %v719 = vunpack.c.l.b16 %v394
      %v720 = vunpack.c.l.b16 %v395
      %v721 = vunpack.c.l.b16 %v396
      %v722 = vunpack.c.l.b16 %v397
      %v723 = vpack.c.b16 %v716, %v715
      %v724 = vpack.c.b16 %v718, %v717
      %v725 = vpack.c.b16 %v720, %v719
      %v726 = vpack.c.b16 %v722, %v721
      %v728 = vsel %vm617, %v723, 0
      %v731 = vsel %vm617, %v724, 0
      %v734 = vsel %vm617, %v725, 0
      %v737 = vsel %vm617, %v726, 0
      %739 = vmatprep.subr.bf16.mxu0 0
      %740 = vmatpush1.bf16.msra.mxu0 %v703
      %741 = vmatprep.subr.bf16.mxu0 0
      %742 = vmatpush1.bf16.msra.mxu0 %v704
      %743 = vmatprep.subr.bf16.mxu0 0
      %744 = vmatpush1.bf16.msra.mxu0 %v705
      %745 = vmatprep.subr.bf16.mxu0 0
      %746 = vmatpush1.bf16.msra.mxu0 %v706
      %747 = vmatprep.subr.bf16.mxu0 0
      %748 = vmatpush1.bf16.msra.mxu0 0
      %749 = vmatprep.subr.bf16.mxu0 0
      %750 = vmatpush1.bf16.msra.mxu0 0
      %751 = vmatprep.subr.bf16.mxu0 0
      %752 = vmatpush1.bf16.msra.mxu0 0
      %753 = vmatprep.subr.bf16.mxu0 0
      %754 = vmatpush1.bf16.msra.mxu0 0
      %755 = vmatprep.subr.bf16.mxu0 0
      %756 = vmatpush1.bf16.msra.mxu0 0
      %757 = vmatprep.subr.bf16.mxu0 0
      %758 = vmatpush1.bf16.msra.mxu0 0
      %759 = vmatprep.subr.bf16.mxu0 0
      %760 = vmatpush1.bf16.msra.mxu0 0
      %761 = vmatprep.subr.bf16.mxu0 0
      %762 = vmatpush1.bf16.msra.mxu0 0
      %763 = vmatprep.subr.bf16.mxu0 0
      %764 = vmatpush1.bf16.msra.mxu0 0
      %765 = vmatprep.subr.bf16.mxu0 0
      %766 = vmatpush1.bf16.msra.mxu0 0
      %767 = vmatprep.subr.bf16.mxu0 0
      %768 = vmatpush1.bf16.msra.mxu0 0
      %769 = vmatprep.subr.bf16.mxu0 0
      %770 = vmatpush1.bf16.msra.mxu0 0
      %771 = vmatprep.mubr.bf16.mxu0 0
      %772 = vmatmul.mubr.bf16.gmra.mrb[0].mxu0 %v728
      %v773 = vpop.f32.mrb[0].mxu0
      %v774 = vadd.f32 0.0, %v773
      %v775 = vpop.f32.mrb[0].mxu0
      %v776 = vpop.f32.mrb[0].mxu0
      %v777 = vadd.f32 0.0, %v776
      %v778 = vpop.f32.mrb[0].mxu0
      %779 = vmatprep.mubr.bf16.mxu0 0
      %780 = vmatmul.mubr.bf16.gmra.mrb[0].mxu0 %v731
      %v781 = vpop.f32.mrb[0].mxu0
      %v782 = vadd.f32 0.0, %v781
      %v783 = vpop.f32.mrb[0].mxu0
      %v784 = vpop.f32.mrb[0].mxu0
      %v785 = vadd.f32 0.0, %v784
      %v786 = vpop.f32.mrb[0].mxu0
      %787 = vmatprep.mubr.bf16.mxu0 0
      %788 = vmatmul.mubr.bf16.gmra.mrb[0].mxu0 %v734
      %v789 = vpop.f32.mrb[0].mxu0
      %v790 = vadd.f32 0.0, %v789
      %v791 = vpop.f32.mrb[0].mxu0
      %v792 = vpop.f32.mrb[0].mxu0
      %v793 = vadd.f32 0.0, %v792
      %v794 = vpop.f32.mrb[0].mxu0
      %795 = vmatprep.mubr.bf16.mxu0 0
      %796 = vmatmul.mubr.bf16.gmra.mrb[0].mxu0 %v737
      %v797 = vpop.f32.mrb[0].mxu0
      %v798 = vadd.f32 0.0, %v797
      %v799 = vpop.f32.mrb[0].mxu0
      %v800 = vpop.f32.mrb[0].mxu0
      %v801 = vadd.f32 0.0, %v800
      %v802 = vpop.f32.mrb[0].mxu0
      %803 = vdwg.mxu0
      %v804 = vmax.f32 %v774, 0.0
      %v805 = vmax.f32 %v777, 0.0
      %v806 = vmax.f32 %v782, 0.0
      %v807 = vmax.f32 %v785, 0.0
      %v808 = vmax.f32 %v790, 0.0
      %v809 = vmax.f32 %v793, 0.0
      %v810 = vmax.f32 %v798, 0.0
      %v811 = vmax.f32 %v801, 0.0
      %v812 = vpack.c.bf16 %v805, %v804
      %v813 = vpack.c.bf16 %v807, %v806
      %v814 = vpack.c.bf16 %v809, %v808
      %v815 = vpack.c.bf16 %v811, %v810
      %v816 = vld [vmem:[%s6] sm:$0xf]
      %v817 = vld [vmem:[%s6 + $0x4] sm:$0xf]
      %v818 = vld [vmem:[%s6 + $0x8] sm:$0xf]
      %v819 = vld [vmem:[%s6 + $0xc] sm:$0xf]
      %v824 = vunpack.c.l.b16 %v816
      %v825 = vunpack.c.l.b16 %v817
      %v826 = vunpack.c.l.b16 %v818
      %v827 = vunpack.c.l.b16 %v819
      %v828 = vpack.c.b16 %v825, %v824
      %v829 = vpack.c.b16 %v827, %v826
      %v833 = vsel %vm434, %v812, 0
      %v836 = vsel %vm434, %v813, 0
      %v839 = vsel %vm434, %v814, 0
      %v842 = vsel %vm434, %v815, 0
      %844 = vmatprep.subr.bf16.mxu0 0
      %845 = vmatpush1.bf16.msra.mxu0 %v828
      %846 = vmatprep.subr.bf16.mxu0 0
      %847 = vmatpush1.bf16.msra.mxu0 %v829
      %848 = vmatprep.subr.bf16.mxu0 0
      %849 = vmatpush1.bf16.msra.mxu0 0
      %850 = vmatprep.subr.bf16.mxu0 0
      %851 = vmatpush1.bf16.msra.mxu0 0
      %852 = vmatprep.subr.bf16.mxu0 0
      %853 = vmatpush1.bf16.msra.mxu0 0
      %854 = vmatprep.subr.bf16.mxu0 0
      %855 = vmatpush1.bf16.msra.mxu0 0
      %856 = vmatprep.subr.bf16.mxu0 0
      %857 = vmatpush1.bf16.msra.mxu0 0
      %858 = vmatprep.subr.bf16.mxu0 0
      %859 = vmatpush1.bf16.msra.mxu0 0
      %860 = vmatprep.subr.bf16.mxu0 0
      %861 = vmatpush1.bf16.msra.mxu0 0
      %862 = vmatprep.subr.bf16.mxu0 0
      %863 = vmatpush1.bf16.msra.mxu0 0
      %864 = vmatprep.subr.bf16.mxu0 0
      %865 = vmatpush1.bf16.msra.mxu0 0
      %866 = vmatprep.subr.bf16.mxu0 0
      %867 = vmatpush1.bf16.msra.mxu0 0
      %868 = vmatprep.subr.bf16.mxu0 0
      %869 = vmatpush1.bf16.msra.mxu0 0
      %870 = vmatprep.subr.bf16.mxu0 0
      %871 = vmatpush1.bf16.msra.mxu0 0
      %872 = vmatprep.subr.bf16.mxu0 0
      %873 = vmatpush1.bf16.msra.mxu0 0
      %874 = vmatprep.subr.bf16.mxu0 0
      %875 = vmatpush1.bf16.msra.mxu0 0
      %876 = vmatprep.mubr.bf16.mxu0 0
      %877 = vmatmul.mubr.bf16.gmra.mrb[0].mxu0 %v833
      %v878 = vpop.f32.mrb[0].mxu0
      %v879 = vadd.f32 0.0, %v878
      %v880 = vpop.f32.mrb[0].mxu0
      %v881 = vpop.f32.mrb[0].mxu0
      %v882 = vadd.f32 0.0, %v881
      %v883 = vpop.f32.mrb[0].mxu0
      %884 = vmatprep.mubr.bf16.mxu0 0
      %885 = vmatmul.mubr.bf16.gmra.mrb[0].mxu0 %v836
      %v886 = vpop.f32.mrb[0].mxu0
      %v887 = vadd.f32 0.0, %v886
      %v888 = vpop.f32.mrb[0].mxu0
      %v889 = vpop.f32.mrb[0].mxu0
      %v890 = vadd.f32 0.0, %v889
      %v891 = vpop.f32.mrb[0].mxu0
      %892 = vmatprep.mubr.bf16.mxu0 0
      %893 = vmatmul.mubr.bf16.gmra.mrb[0].mxu0 %v839
      %v894 = vpop.f32.mrb[0].mxu0
      %v895 = vadd.f32 0.0, %v894
      %v896 = vpop.f32.mrb[0].mxu0
      %v897 = vpop.f32.mrb[0].mxu0
      %v898 = vadd.f32 0.0, %v897
      %v899 = vpop.f32.mrb[0].mxu0
      %900 = vmatprep.mubr.bf16.mxu0 0
      %901 = vmatmul.mubr.bf16.gmra.mrb[0].mxu0 %v842
      %v902 = vpop.f32.mrb[0].mxu0
      %v903 = vadd.f32 0.0, %v902
      %v904 = vpop.f32.mrb[0].mxu0
      %v905 = vpop.f32.mrb[0].mxu0
      %v906 = vadd.f32 0.0, %v905
      %v907 = vpop.f32.mrb[0].mxu0
      %908 = vdwg.mxu0
      %v909 = vpack.c.bf16 %v696, %v695
      %v910 = vpack.c.bf16 %v698, %v697
      %v911 = vpack.c.bf16 %v700, %v699
      %v912 = vpack.c.bf16 %v702, %v701
      %913 = vmatprep.subr.bf16.mxu0 0
      %914 = vmatpush1.bf16.msra.mxu0 %v909
      %915 = vmatprep.subr.bf16.mxu0 0
      %916 = vmatpush1.bf16.msra.mxu0 %v910
      %917 = vmatprep.subr.bf16.mxu0 0
      %918 = vmatpush1.bf16.msra.mxu0 %v911
      %919 = vmatprep.subr.bf16.mxu0 0
      %920 = vmatpush1.bf16.msra.mxu0 %v912
      %921 = vmatprep.subr.bf16.mxu0 0
      %922 = vmatpush1.bf16.msra.mxu0 0
      %923 = vmatprep.subr.bf16.mxu0 0
      %924 = vmatpush1.bf16.msra.mxu0 0
      %925 = vmatprep.subr.bf16.mxu0 0
      %926 = vmatpush1.bf16.msra.mxu0 0
      %927 = vmatprep.subr.bf16.mxu0 0
      %928 = vmatpush1.bf16.msra.mxu0 0
      %929 = vmatprep.subr.bf16.mxu0 0
      %930 = vmatpush1.bf16.msra.mxu0 0
      %931 = vmatprep.subr.bf16.mxu0 0
      %932 = vmatpush1.bf16.msra.mxu0 0
      %933 = vmatprep.subr.bf16.mxu0 0
      %934 = vmatpush1.bf16.msra.mxu0 0
      %935 = vmatprep.subr.bf16.mxu0 0
      %936 = vmatpush1.bf16.msra.mxu0 0
      %937 = vmatprep.subr.bf16.mxu0 0
      %938 = vmatpush1.bf16.msra.mxu0 0
      %939 = vmatprep.subr.bf16.mxu0 0
      %940 = vmatpush1.bf16.msra.mxu0 0
      %941 = vmatprep.subr.bf16.mxu0 0
      %942 = vmatpush1.bf16.msra.mxu0 0
      %943 = vmatprep.subr.bf16.mxu0 0
      %944 = vmatpush1.bf16.msra.mxu0 0
      %945 = vmatprep.mubr.bf16.mxu0 0
      %946 = vmatmul.mubr.bf16.gmra.mrb[0].mxu0 %v619
      %v947 = vpop.f32.mrb[0].mxu0
      %v948 = vadd.f32 0.0, %v947
      %v949 = vpop.f32.mrb[0].mxu0
      %v950 = vpop.f32.mrb[0].mxu0
      %v951 = vadd.f32 0.0, %v950
      %v952 = vpop.f32.mrb[0].mxu0
      %953 = vmatprep.mubr.bf16.mxu0 0
      %954 = vmatmul.mubr.bf16.gmra.mrb[0].mxu0 %v622
      %v955 = vpop.f32.mrb[0].mxu0
      %v956 = vadd.f32 0.0, %v955
      %v957 = vpop.f32.mrb[0].mxu0
      %v958 = vpop.f32.mrb[0].mxu0
      %v959 = vadd.f32 0.0, %v958
      %v960 = vpop.f32.mrb[0].mxu0
      %961 = vmatprep.mubr.bf16.mxu0 0
      %962 = vmatmul.mubr.bf16.gmra.mrb[0].mxu0 %v625
      %v963 = vpop.f32.mrb[0].mxu0
      %v964 = vadd.f32 0.0, %v963
      %v965 = vpop.f32.mrb[0].mxu0
      %v966 = vpop.f32.mrb[0].mxu0
      %v967 = vadd.f32 0.0, %v966
      %v968 = vpop.f32.mrb[0].mxu0
      %969 = vmatprep.mubr.bf16.mxu0 0
      %970 = vmatmul.mubr.bf16.gmra.mrb[0].mxu0 %v628
      %v971 = vpop.f32.mrb[0].mxu0
      %v972 = vadd.f32 0.0, %v971
      %v973 = vpop.f32.mrb[0].mxu0
      %v974 = vpop.f32.mrb[0].mxu0
      %v975 = vadd.f32 0.0, %v974
      %v976 = vpop.f32.mrb[0].mxu0
      %977 = vdwg.mxu0
      %v978 = vpack.c.bf16 %v951, %v948
      %v979 = vpack.c.bf16 %v959, %v956
      %v980 = vpack.c.bf16 %v967, %v964
      %v981 = vpack.c.bf16 %v975, %v972
      %v982 = vld [vmem:[%s5] sm:$0xf]
      %v983 = vld [vmem:[%s5 + $0x4] sm:$0xf]
      %v984 = vld [vmem:[%s5 + $0x8] sm:$0xf]
      %v985 = vld [vmem:[%s5 + $0xc] sm:$0xf]
      %v990 = vunpack.c.l.b16 %v982
      %v991 = vunpack.c.l.b16 %v983
      %v992 = vunpack.c.l.b16 %v984
      %v993 = vunpack.c.l.b16 %v985
      %v994 = vpack.c.b16 %v991, %v990
      %v995 = vpack.c.b16 %v993, %v992
      %v999 = vsel %vm434, %v978, 0
      %v1002 = vsel %vm434, %v979, 0
      %v1005 = vsel %vm434, %v980, 0
      %v1008 = vsel %vm434, %v981, 0
      %1010 = vmatprep.subr.bf16.mxu0 0
      %1011 = vmatpush1.bf16.msra.mxu0 %v994
      %1012 = vmatprep.subr.bf16.mxu0 0
      %1013 = vmatpush1.bf16.msra.mxu0 %v995
      %1014 = vmatprep.subr.bf16.mxu0 0
      %1015 = vmatpush1.bf16.msra.mxu0 0
      %1016 = vmatprep.subr.bf16.mxu0 0
      %1017 = vmatpush1.bf16.msra.mxu0 0
      %1018 = vmatprep.subr.bf16.mxu0 0
      %1019 = vmatpush1.bf16.msra.mxu0 0
      %1020 = vmatprep.subr.bf16.mxu0 0
      %1021 = vmatpush1.bf16.msra.mxu0 0
      %1022 = vmatprep.subr.bf16.mxu0 0
      %1023 = vmatpush1.bf16.msra.mxu0 0
      %1024 = vmatprep.subr.bf16.mxu0 0
      %1025 = vmatpush1.bf16.msra.mxu0 0
      %1026 = vmatprep.subr.bf16.mxu0 0
      %1027 = vmatpush1.bf16.msra.mxu0 0
      %1028 = vmatprep.subr.bf16.mxu0 0
      %1029 = vmatpush1.bf16.msra.mxu0 0
      %1030 = vmatprep.subr.bf16.mxu0 0
      %1031 = vmatpush1.bf16.msra.mxu0 0
      %1032 = vmatprep.subr.bf16.mxu0 0
      %1033 = vmatpush1.bf16.msra.mxu0 0
      %1034 = vmatprep.subr.bf16.mxu0 0
      %1035 = vmatpush1.bf16.msra.mxu0 0
      %1036 = vmatprep.subr.bf16.mxu0 0
      %1037 = vmatpush1.bf16.msra.mxu0 0
      %1038 = vmatprep.subr.bf16.mxu0 0
      %1039 = vmatpush1.bf16.msra.mxu0 0
      %1040 = vmatprep.subr.bf16.mxu0 0
      %1041 = vmatpush1.bf16.msra.mxu0 0
      %1042 = vmatprep.mubr.bf16.mxu0 0
      %1043 = vmatmul.mubr.bf16.gmra.mrb[0].mxu0 %v999
      %v1044 = vpop.f32.mrb[0].mxu0
      %v1045 = vadd.f32 %v879, %v1044
      %v1046 = vpop.f32.mrb[0].mxu0
      %v1047 = vpop.f32.mrb[0].mxu0
      %v1048 = vadd.f32 %v882, %v1047
      %v1049 = vpop.f32.mrb[0].mxu0
      %1050 = vmatprep.mubr.bf16.mxu0 0
      %1051 = vmatmul.mubr.bf16.gmra.mrb[0].mxu0 %v1002
      %v1052 = vpop.f32.mrb[0].mxu0
      %v1053 = vadd.f32 %v887, %v1052
      %v1054 = vpop.f32.mrb[0].mxu0
      %v1055 = vpop.f32.mrb[0].mxu0
      %v1056 = vadd.f32 %v890, %v1055
      %v1057 = vpop.f32.mrb[0].mxu0
      %1058 = vmatprep.mubr.bf16.mxu0 0
      %1059 = vmatmul.mubr.bf16.gmra.mrb[0].mxu0 %v1005
      %v1060 = vpop.f32.mrb[0].mxu0
      %v1061 = vadd.f32 %v895, %v1060
      %v1062 = vpop.f32.mrb[0].mxu0
      %v1063 = vpop.f32.mrb[0].mxu0
      %v1064 = vadd.f32 %v898, %v1063
      %v1065 = vpop.f32.mrb[0].mxu0
      %1066 = vmatprep.mubr.bf16.mxu0 0
      %1067 = vmatmul.mubr.bf16.gmra.mrb[0].mxu0 %v1008
      %v1068 = vpop.f32.mrb[0].mxu0
      %v1069 = vadd.f32 %v903, %v1068
      %v1070 = vpop.f32.mrb[0].mxu0
      %v1071 = vpop.f32.mrb[0].mxu0
      %v1072 = vadd.f32 %v906, %v1071
      %v1073 = vpop.f32.mrb[0].mxu0
      %1074 = vdwg.mxu0
      %v1075 = vmax.f32 %v1045, 0.0
      %v1076 = vmax.f32 %v1048, 0.0
      %v1077 = vmax.f32 %v1053, 0.0
      %v1078 = vmax.f32 %v1056, 0.0
      %v1079 = vmax.f32 %v1061, 0.0
      %v1080 = vmax.f32 %v1064, 0.0
      %v1081 = vmax.f32 %v1069, 0.0
      %v1082 = vmax.f32 %v1072, 0.0
      %v1083 = vpack.c.bf16 %v1076, %v1075
      %v1084 = vpack.c.bf16 %v1078, %v1077
      %v1085 = vpack.c.bf16 %v1080, %v1079
      %v1086 = vpack.c.bf16 %v1082, %v1081
      %1087 = vmatprep.subr.bf16.mxu0 0
      %1088 = vmatpush1.bf16.msra.mxu0 %v1083
      %1089 = vmatprep.subr.bf16.mxu0 0
      %1090 = vmatpush1.bf16.msra.mxu0 %v1084
      %1091 = vmatprep.subr.bf16.mxu0 0
      %1092 = vmatpush1.bf16.msra.mxu0 %v1085
      %1093 = vmatprep.subr.bf16.mxu0 0
      %1094 = vmatpush1.bf16.msra.mxu0 %v1086
      %1095 = vmatprep.subr.bf16.mxu0 0
      %1096 = vmatpush1.bf16.msra.mxu0 0
      %1097 = vmatprep.subr.bf16.mxu0 0
      %1098 = vmatpush1.bf16.msra.mxu0 0
      %1099 = vmatprep.subr.bf16.mxu0 0
      %1100 = vmatpush1.bf16.msra.mxu0 0
      %1101 = vmatprep.subr.bf16.mxu0 0
      %1102 = vmatpush1.bf16.msra.mxu0 0
      %1103 = vmatprep.subr.bf16.mxu0 0
      %1104 = vmatpush1.bf16.msra.mxu0 0
      %1105 = vmatprep.subr.bf16.mxu0 0
      %1106 = vmatpush1.bf16.msra.mxu0 0
      %1107 = vmatprep.subr.bf16.mxu0 0
      %1108 = vmatpush1.bf16.msra.mxu0 0
      %1109 = vmatprep.subr.bf16.mxu0 0
      %1110 = vmatpush1.bf16.msra.mxu0 0
      %1111 = vmatprep.subr.bf16.mxu0 0
      %1112 = vmatpush1.bf16.msra.mxu0 0
      %1113 = vmatprep.subr.bf16.mxu0 0
      %1114 = vmatpush1.bf16.msra.mxu0 0
      %1115 = vmatprep.subr.bf16.mxu0 0
      %1116 = vmatpush1.bf16.msra.mxu0 0
      %1117 = vmatprep.subr.bf16.mxu0 0
      %1118 = vmatpush1.bf16.msra.mxu0 0
      %1119 = vmatprep.mubr.bf16.mxu0 0
      %1120 = vmatmul.mubr.bf16.gmra.mrb[0].mxu0 %v619
      %v1121 = vpop.f32.mrb[0].mxu0
      %v1122 = vadd.f32 0.0, %v1121
      %v1123 = vpop.f32.mrb[0].mxu0
      %v1124 = vpop.f32.mrb[0].mxu0
      %v1125 = vadd.f32 0.0, %v1124
      %v1126 = vpop.f32.mrb[0].mxu0
      %1127 = vmatprep.mubr.bf16.mxu0 0
      %1128 = vmatmul.mubr.bf16.gmra.mrb[0].mxu0 %v622
      %v1129 = vpop.f32.mrb[0].mxu0
      %v1130 = vadd.f32 0.0, %v1129
      %v1131 = vpop.f32.mrb[0].mxu0
      %v1132 = vpop.f32.mrb[0].mxu0
      %v1133 = vadd.f32 0.0, %v1132
      %v1134 = vpop.f32.mrb[0].mxu0
      %1135 = vmatprep.mubr.bf16.mxu0 0
      %1136 = vmatmul.mubr.bf16.gmra.mrb[0].mxu0 %v625
      %v1137 = vpop.f32.mrb[0].mxu0
      %v1138 = vadd.f32 0.0, %v1137
      %v1139 = vpop.f32.mrb[0].mxu0
      %v1140 = vpop.f32.mrb[0].mxu0
      %v1141 = vadd.f32 0.0, %v1140
      %v1142 = vpop.f32.mrb[0].mxu0
      %1143 = vmatprep.mubr.bf16.mxu0 0
      %1144 = vmatmul.mubr.bf16.gmra.mrb[0].mxu0 %v628
      %v1145 = vpop.f32.mrb[0].mxu0
      %v1146 = vadd.f32 0.0, %v1145
      %v1147 = vpop.f32.mrb[0].mxu0
      %v1148 = vpop.f32.mrb[0].mxu0
      %v1149 = vadd.f32 0.0, %v1148
      %v1150 = vpop.f32.mrb[0].mxu0
      %1151 = vdwg.mxu0
      %v1152 = vpack.c.bf16 %v1125, %v1122
      %v1153 = vpack.c.bf16 %v1133, %v1130
      %v1154 = vpack.c.bf16 %v1141, %v1138
      %v1155 = vpack.c.bf16 %v1149, %v1146
      %s1156 = scalar_lea.vmem %s5, 16
      %v1157 = vld [vmem:[%s1156] sm:$0xf]
      %v1158 = vld [vmem:[%s1156 + $0x4] sm:$0xf]
      %v1159 = vld [vmem:[%s1156 + $0x8] sm:$0xf]
      %v1160 = vld [vmem:[%s1156 + $0xc] sm:$0xf]
      %v1165 = vunpack.c.l.b16 %v1157
      %v1166 = vunpack.c.l.b16 %v1158
      %v1167 = vunpack.c.l.b16 %v1159
      %v1168 = vunpack.c.l.b16 %v1160
      %v1169 = vpack.c.b16 %v1166, %v1165
      %v1170 = vpack.c.b16 %v1168, %v1167
      %1181 = vrot.lane.b32.xlu0 %v879, 96
      %v1182 = vpop.permute.xlu0 %1181
      %1183 = vrot.lane.b32.xlu0 %v882, 96
      %v1184 = vpop.permute.xlu0 %1183
      %1185 = vrot.lane.b32.xlu0 %v887, 96
      %v1186 = vpop.permute.xlu0 %1185
      %1187 = vrot.lane.b32.xlu0 %v890, 96
      %v1188 = vpop.permute.xlu0 %1187
      %1189 = vrot.lane.b32.xlu0 %v895, 96
      %v1190 = vpop.permute.xlu0 %1189
      %1191 = vrot.lane.b32.xlu0 %v898, 96
      %v1192 = vpop.permute.xlu0 %1191
      %1193 = vrot.lane.b32.xlu0 %v903, 96
      %v1194 = vpop.permute.xlu0 %1193
      %1195 = vrot.lane.b32.xlu0 %v906, 96
      %v1196 = vpop.permute.xlu0 %1195
      %v1206 = vsel %vm434, %v1152, 0
      %v1209 = vsel %vm434, %v1153, 0
      %v1212 = vsel %vm434, %v1154, 0
      %v1215 = vsel %vm434, %v1155, 0
      %1217 = vmatprep.subr.bf16.mxu0 0
      %1218 = vmatpush1.bf16.msra.mxu0 %v1169
      %1219 = vmatprep.subr.bf16.mxu0 0
      %1220 = vmatpush1.bf16.msra.mxu0 %v1170
      %1221 = vmatprep.subr.bf16.mxu0 0
      %1222 = vmatpush1.bf16.msra.mxu0 0
      %1223 = vmatprep.subr.bf16.mxu0 0
      %1224 = vmatpush1.bf16.msra.mxu0 0
      %1225 = vmatprep.subr.bf16.mxu0 0
      %1226 = vmatpush1.bf16.msra.mxu0 0
      %1227 = vmatprep.subr.bf16.mxu0 0
      %1228 = vmatpush1.bf16.msra.mxu0 0
      %1229 = vmatprep.subr.bf16.mxu0 0
      %1230 = vmatpush1.bf16.msra.mxu0 0
      %1231 = vmatprep.subr.bf16.mxu0 0
      %1232 = vmatpush1.bf16.msra.mxu0 0
      %1233 = vmatprep.subr.bf16.mxu0 0
      %1234 = vmatpush1.bf16.msra.mxu0 0
      %1235 = vmatprep.subr.bf16.mxu0 0
      %1236 = vmatpush1.bf16.msra.mxu0 0
      %1237 = vmatprep.subr.bf16.mxu0 0
      %1238 = vmatpush1.bf16.msra.mxu0 0
      %1239 = vmatprep.subr.bf16.mxu0 0
      %1240 = vmatpush1.bf16.msra.mxu0 0
      %1241 = vmatprep.subr.bf16.mxu0 0
      %1242 = vmatpush1.bf16.msra.mxu0 0
      %1243 = vmatprep.subr.bf16.mxu0 0
      %1244 = vmatpush1.bf16.msra.mxu0 0
      %1245 = vmatprep.subr.bf16.mxu0 0
      %1246 = vmatpush1.bf16.msra.mxu0 0
      %1247 = vmatprep.subr.bf16.mxu0 0
      %1248 = vmatpush1.bf16.msra.mxu0 0
      %1249 = vmatprep.mubr.bf16.mxu0 0
      %1250 = vmatmul.mubr.bf16.gmra.mrb[0].mxu0 %v1206
      %v1251 = vpop.f32.mrb[0].mxu0
      %v1252 = vadd.f32 %v1182, %v1251
      %v1253 = vpop.f32.mrb[0].mxu0
      %v1254 = vpop.f32.mrb[0].mxu0
      %v1255 = vadd.f32 %v1184, %v1254
      %v1256 = vpop.f32.mrb[0].mxu0
      %1257 = vmatprep.mubr.bf16.mxu0 0
      %1258 = vmatmul.mubr.bf16.gmra.mrb[0].mxu0 %v1209
      %v1259 = vpop.f32.mrb[0].mxu0
      %v1260 = vadd.f32 %v1186, %v1259
      %v1261 = vpop.f32.mrb[0].mxu0
      %v1262 = vpop.f32.mrb[0].mxu0
      %v1263 = vadd.f32 %v1188, %v1262
      %v1264 = vpop.f32.mrb[0].mxu0
      %1265 = vmatprep.mubr.bf16.mxu0 0
      %1266 = vmatmul.mubr.bf16.gmra.mrb[0].mxu0 %v1212
      %v1267 = vpop.f32.mrb[0].mxu0
      %v1268 = vadd.f32 %v1190, %v1267
      %v1269 = vpop.f32.mrb[0].mxu0
      %v1270 = vpop.f32.mrb[0].mxu0
      %v1271 = vadd.f32 %v1192, %v1270
      %v1272 = vpop.f32.mrb[0].mxu0
      %1273 = vmatprep.mubr.bf16.mxu0 0
      %1274 = vmatmul.mubr.bf16.gmra.mrb[0].mxu0 %v1215
      %v1275 = vpop.f32.mrb[0].mxu0
      %v1276 = vadd.f32 %v1194, %v1275
      %v1277 = vpop.f32.mrb[0].mxu0
      %v1278 = vpop.f32.mrb[0].mxu0
      %v1279 = vadd.f32 %v1196, %v1278
      %v1280 = vpop.f32.mrb[0].mxu0
      %1281 = vdwg.mxu0
      %v1282 = vmax.f32 %v1252, 0.0
      %v1283 = vmax.f32 %v1255, 0.0
      %v1284 = vmax.f32 %v1260, 0.0
      %v1285 = vmax.f32 %v1263, 0.0
      %v1286 = vmax.f32 %v1268, 0.0
      %v1287 = vmax.f32 %v1271, 0.0
      %v1288 = vmax.f32 %v1276, 0.0
      %v1289 = vmax.f32 %v1279, 0.0
      %v1290 = vpack.c.bf16 %v1283, %v1282
      %v1291 = vpack.c.bf16 %v1285, %v1284
      %v1292 = vpack.c.bf16 %v1287, %v1286
      %v1293 = vpack.c.bf16 %v1289, %v1288
      %1294 = vmatprep.subr.bf16.mxu0 0
      %1295 = vmatpush1.bf16.msra.mxu0 %v1290
      %1296 = vmatprep.subr.bf16.mxu0 0
      %1297 = vmatpush1.bf16.msra.mxu0 %v1291
      %1298 = vmatprep.subr.bf16.mxu0 0
      %1299 = vmatpush1.bf16.msra.mxu0 %v1292
      %1300 = vmatprep.subr.bf16.mxu0 0
      %1301 = vmatpush1.bf16.msra.mxu0 %v1293
      %1302 = vmatprep.subr.bf16.mxu0 0
      %1303 = vmatpush1.bf16.msra.mxu0 0
      %1304 = vmatprep.subr.bf16.mxu0 0
      %1305 = vmatpush1.bf16.msra.mxu0 0
      %1306 = vmatprep.subr.bf16.mxu0 0
      %1307 = vmatpush1.bf16.msra.mxu0 0
      %1308 = vmatprep.subr.bf16.mxu0 0
      %1309 = vmatpush1.bf16.msra.mxu0 0
      %1310 = vmatprep.subr.bf16.mxu0 0
      %1311 = vmatpush1.bf16.msra.mxu0 0
      %1312 = vmatprep.subr.bf16.mxu0 0
      %1313 = vmatpush1.bf16.msra.mxu0 0
      %1314 = vmatprep.subr.bf16.mxu0 0
      %1315 = vmatpush1.bf16.msra.mxu0 0
      %1316 = vmatprep.subr.bf16.mxu0 0
      %1317 = vmatpush1.bf16.msra.mxu0 0
      %1318 = vmatprep.subr.bf16.mxu0 0
      %1319 = vmatpush1.bf16.msra.mxu0 0
      %1320 = vmatprep.subr.bf16.mxu0 0
      %1321 = vmatpush1.bf16.msra.mxu0 0
      %1322 = vmatprep.subr.bf16.mxu0 0
      %1323 = vmatpush1.bf16.msra.mxu0 0
      %1324 = vmatprep.subr.bf16.mxu0 0
      %1325 = vmatpush1.bf16.msra.mxu0 0
      %1326 = vmatprep.mubr.bf16.mxu0 0
      %1327 = vmatmul.mubr.bf16.gmra.mrb[0].mxu0 %v619
      %v1328 = vpop.f32.mrb[0].mxu0
      %v1329 = vadd.f32 0.0, %v1328
      %v1330 = vpop.f32.mrb[0].mxu0
      %v1331 = vpop.f32.mrb[0].mxu0
      %v1332 = vadd.f32 0.0, %v1331
      %v1333 = vpop.f32.mrb[0].mxu0
      %1334 = vmatprep.mubr.bf16.mxu0 0
      %1335 = vmatmul.mubr.bf16.gmra.mrb[0].mxu0 %v622
      %v1336 = vpop.f32.mrb[0].mxu0
      %v1337 = vadd.f32 0.0, %v1336
      %v1338 = vpop.f32.mrb[0].mxu0
      %v1339 = vpop.f32.mrb[0].mxu0
      %v1340 = vadd.f32 0.0, %v1339
      %v1341 = vpop.f32.mrb[0].mxu0
      %1342 = vmatprep.mubr.bf16.mxu0 0
      %1343 = vmatmul.mubr.bf16.gmra.mrb[0].mxu0 %v625
      %v1344 = vpop.f32.mrb[0].mxu0
      %v1345 = vadd.f32 0.0, %v1344
      %v1346 = vpop.f32.mrb[0].mxu0
      %v1347 = vpop.f32.mrb[0].mxu0
      %v1348 = vadd.f32 0.0, %v1347
      %v1349 = vpop.f32.mrb[0].mxu0
      %1350 = vmatprep.mubr.bf16.mxu0 0
      %1351 = vmatmul.mubr.bf16.gmra.mrb[0].mxu0 %v628
      %v1352 = vpop.f32.mrb[0].mxu0
      %v1353 = vadd.f32 0.0, %v1352
      %v1354 = vpop.f32.mrb[0].mxu0
      %v1355 = vpop.f32.mrb[0].mxu0
      %v1356 = vadd.f32 0.0, %v1355
      %v1357 = vpop.f32.mrb[0].mxu0
      %1358 = vdwg.mxu0
      %v1359 = vpack.c.bf16 %v1332, %v1329
      %v1360 = vpack.c.bf16 %v1340, %v1337
      %v1361 = vpack.c.bf16 %v1348, %v1345
      %v1362 = vpack.c.bf16 %v1356, %v1353
      %s1363 = scalar_lea.vmem %s5, 32
      %v1364 = vld [vmem:[%s1363] sm:$0xf]
      %v1365 = vld [vmem:[%s1363 + $0x4] sm:$0xf]
      %v1366 = vld [vmem:[%s1363 + $0x8] sm:$0xf]
      %v1367 = vld [vmem:[%s1363 + $0xc] sm:$0xf]
      %v1372 = vunpack.c.l.b16 %v1364
      %v1373 = vunpack.c.l.b16 %v1365
      %v1374 = vunpack.c.l.b16 %v1366
      %v1375 = vunpack.c.l.b16 %v1367
      %v1376 = vpack.c.b16 %v1373, %v1372
      %v1377 = vpack.c.b16 %v1375, %v1374
      %1380 = vrot.lane.b32.xlu0 %v879, 64
      %v1381 = vpop.permute.xlu0 %1380
      %1382 = vrot.lane.b32.xlu0 %v882, 64
      %v1383 = vpop.permute.xlu0 %1382
      %1384 = vrot.lane.b32.xlu0 %v887, 64
      %v1385 = vpop.permute.xlu0 %1384
      %1386 = vrot.lane.b32.xlu0 %v890, 64
      %v1387 = vpop.permute.xlu0 %1386
      %1388 = vrot.lane.b32.xlu0 %v895, 64
      %v1389 = vpop.permute.xlu0 %1388
      %1390 = vrot.lane.b32.xlu0 %v898, 64
      %v1391 = vpop.permute.xlu0 %1390
      %1392 = vrot.lane.b32.xlu0 %v903, 64
      %v1393 = vpop.permute.xlu0 %1392
      %1394 = vrot.lane.b32.xlu0 %v906, 64
      %v1395 = vpop.permute.xlu0 %1394
      %v1405 = vsel %vm434, %v1359, 0
      %v1408 = vsel %vm434, %v1360, 0
      %v1411 = vsel %vm434, %v1361, 0
      %v1414 = vsel %vm434, %v1362, 0
      %1416 = vmatprep.subr.bf16.mxu0 0
      %1417 = vmatpush1.bf16.msra.mxu0 %v1376
      %1418 = vmatprep.subr.bf16.mxu0 0
      %1419 = vmatpush1.bf16.msra.mxu0 %v1377
      %1420 = vmatprep.subr.bf16.mxu0 0
      %1421 = vmatpush1.bf16.msra.mxu0 0
      %1422 = vmatprep.subr.bf16.mxu0 0
      %1423 = vmatpush1.bf16.msra.mxu0 0
      %1424 = vmatprep.subr.bf16.mxu0 0
      %1425 = vmatpush1.bf16.msra.mxu0 0
      %1426 = vmatprep.subr.bf16.mxu0 0
      %1427 = vmatpush1.bf16.msra.mxu0 0
      %1428 = vmatprep.subr.bf16.mxu0 0
      %1429 = vmatpush1.bf16.msra.mxu0 0
      %1430 = vmatprep.subr.bf16.mxu0 0
      %1431 = vmatpush1.bf16.msra.mxu0 0
      %1432 = vmatprep.subr.bf16.mxu0 0
      %1433 = vmatpush1.bf16.msra.mxu0 0
      %1434 = vmatprep.subr.bf16.mxu0 0
      %1435 = vmatpush1.bf16.msra.mxu0 0
      %1436 = vmatprep.subr.bf16.mxu0 0
      %1437 = vmatpush1.bf16.msra.mxu0 0
      %1438 = vmatprep.subr.bf16.mxu0 0
      %1439 = vmatpush1.bf16.msra.mxu0 0
      %1440 = vmatprep.subr.bf16.mxu0 0
      %1441 = vmatpush1.bf16.msra.mxu0 0
      %1442 = vmatprep.subr.bf16.mxu0 0
      %1443 = vmatpush1.bf16.msra.mxu0 0
      %1444 = vmatprep.subr.bf16.mxu0 0
      %1445 = vmatpush1.bf16.msra.mxu0 0
      %1446 = vmatprep.subr.bf16.mxu0 0
      %1447 = vmatpush1.bf16.msra.mxu0 0
      %1448 = vmatprep.mubr.bf16.mxu0 0
      %1449 = vmatmul.mubr.bf16.gmra.mrb[0].mxu0 %v1405
      %v1450 = vpop.f32.mrb[0].mxu0
      %v1451 = vadd.f32 %v1381, %v1450
      %v1452 = vpop.f32.mrb[0].mxu0
      %v1453 = vpop.f32.mrb[0].mxu0
      %v1454 = vadd.f32 %v1383, %v1453
      %v1455 = vpop.f32.mrb[0].mxu0
      %1456 = vmatprep.mubr.bf16.mxu0 0
      %1457 = vmatmul.mubr.bf16.gmra.mrb[0].mxu0 %v1408
      %v1458 = vpop.f32.mrb[0].mxu0
      %v1459 = vadd.f32 %v1385, %v1458
      %v1460 = vpop.f32.mrb[0].mxu0
      %v1461 = vpop.f32.mrb[0].mxu0
      %v1462 = vadd.f32 %v1387, %v1461
      %v1463 = vpop.f32.mrb[0].mxu0
      %1464 = vmatprep.mubr.bf16.mxu0 0
      %1465 = vmatmul.mubr.bf16.gmra.mrb[0].mxu0 %v1411
      %v1466 = vpop.f32.mrb[0].mxu0
      %v1467 = vadd.f32 %v1389, %v1466
      %v1468 = vpop.f32.mrb[0].mxu0
      %v1469 = vpop.f32.mrb[0].mxu0
      %v1470 = vadd.f32 %v1391, %v1469
      %v1471 = vpop.f32.mrb[0].mxu0
      %1472 = vmatprep.mubr.bf16.mxu0 0
      %1473 = vmatmul.mubr.bf16.gmra.mrb[0].mxu0 %v1414
      %v1474 = vpop.f32.mrb[0].mxu0
      %v1475 = vadd.f32 %v1393, %v1474
      %v1476 = vpop.f32.mrb[0].mxu0
      %v1477 = vpop.f32.mrb[0].mxu0
      %v1478 = vadd.f32 %v1395, %v1477
      %v1479 = vpop.f32.mrb[0].mxu0
      %1480 = vdwg.mxu0
      %v1481 = vmax.f32 %v1451, 0.0
      %v1482 = vmax.f32 %v1454, 0.0
      %v1483 = vmax.f32 %v1459, 0.0
      %v1484 = vmax.f32 %v1462, 0.0
      %v1485 = vmax.f32 %v1467, 0.0
      %v1486 = vmax.f32 %v1470, 0.0
      %v1487 = vmax.f32 %v1475, 0.0
      %v1488 = vmax.f32 %v1478, 0.0
      %v1489 = vpack.c.bf16 %v1482, %v1481
      %v1490 = vpack.c.bf16 %v1484, %v1483
      %v1491 = vpack.c.bf16 %v1486, %v1485
      %v1492 = vpack.c.bf16 %v1488, %v1487
      %1493 = vmatprep.subr.bf16.mxu0 0
      %1494 = vmatpush1.bf16.msra.mxu0 %v1489
      %1495 = vmatprep.subr.bf16.mxu0 0
      %1496 = vmatpush1.bf16.msra.mxu0 %v1490
      %1497 = vmatprep.subr.bf16.mxu0 0
      %1498 = vmatpush1.bf16.msra.mxu0 %v1491
      %1499 = vmatprep.subr.bf16.mxu0 0
      %1500 = vmatpush1.bf16.msra.mxu0 %v1492
      %1501 = vmatprep.subr.bf16.mxu0 0
      %1502 = vmatpush1.bf16.msra.mxu0 0
      %1503 = vmatprep.subr.bf16.mxu0 0
      %1504 = vmatpush1.bf16.msra.mxu0 0
      %1505 = vmatprep.subr.bf16.mxu0 0
      %1506 = vmatpush1.bf16.msra.mxu0 0
      %1507 = vmatprep.subr.bf16.mxu0 0
      %1508 = vmatpush1.bf16.msra.mxu0 0
      %1509 = vmatprep.subr.bf16.mxu0 0
      %1510 = vmatpush1.bf16.msra.mxu0 0
      %1511 = vmatprep.subr.bf16.mxu0 0
      %1512 = vmatpush1.bf16.msra.mxu0 0
      %1513 = vmatprep.subr.bf16.mxu0 0
      %1514 = vmatpush1.bf16.msra.mxu0 0
      %1515 = vmatprep.subr.bf16.mxu0 0
      %1516 = vmatpush1.bf16.msra.mxu0 0
      %1517 = vmatprep.subr.bf16.mxu0 0
      %1518 = vmatpush1.bf16.msra.mxu0 0
      %1519 = vmatprep.subr.bf16.mxu0 0
      %1520 = vmatpush1.bf16.msra.mxu0 0
      %1521 = vmatprep.subr.bf16.mxu0 0
      %1522 = vmatpush1.bf16.msra.mxu0 0
      %1523 = vmatprep.subr.bf16.mxu0 0
      %1524 = vmatpush1.bf16.msra.mxu0 0
      %1525 = vmatprep.mubr.bf16.mxu0 0
      %1526 = vmatmul.mubr.bf16.gmra.mrb[0].mxu0 %v619
      %v1527 = vpop.f32.mrb[0].mxu0
      %v1528 = vadd.f32 0.0, %v1527
      %v1529 = vpop.f32.mrb[0].mxu0
      %v1530 = vpop.f32.mrb[0].mxu0
      %v1531 = vadd.f32 0.0, %v1530
      %v1532 = vpop.f32.mrb[0].mxu0
      %1533 = vmatprep.mubr.bf16.mxu0 0
      %1534 = vmatmul.mubr.bf16.gmra.mrb[0].mxu0 %v622
      %v1535 = vpop.f32.mrb[0].mxu0
      %v1536 = vadd.f32 0.0, %v1535
      %v1537 = vpop.f32.mrb[0].mxu0
      %v1538 = vpop.f32.mrb[0].mxu0
      %v1539 = vadd.f32 0.0, %v1538
      %v1540 = vpop.f32.mrb[0].mxu0
      %1541 = vmatprep.mubr.bf16.mxu0 0
      %1542 = vmatmul.mubr.bf16.gmra.mrb[0].mxu0 %v625
      %v1543 = vpop.f32.mrb[0].mxu0
      %v1544 = vadd.f32 0.0, %v1543
      %v1545 = vpop.f32.mrb[0].mxu0
      %v1546 = vpop.f32.mrb[0].mxu0
      %v1547 = vadd.f32 0.0, %v1546
      %v1548 = vpop.f32.mrb[0].mxu0
      %1549 = vmatprep.mubr.bf16.mxu0 0
      %1550 = vmatmul.mubr.bf16.gmra.mrb[0].mxu0 %v628
      %v1551 = vpop.f32.mrb[0].mxu0
      %v1552 = vadd.f32 0.0, %v1551
      %v1553 = vpop.f32.mrb[0].mxu0
      %v1554 = vpop.f32.mrb[0].mxu0
      %v1555 = vadd.f32 0.0, %v1554
      %v1556 = vpop.f32.mrb[0].mxu0
      %1557 = vdwg.mxu0
      %v1558 = vpack.c.bf16 %v1531, %v1528
      %v1559 = vpack.c.bf16 %v1539, %v1536
      %v1560 = vpack.c.bf16 %v1547, %v1544
      %v1561 = vpack.c.bf16 %v1555, %v1552
      %s1562 = scalar_lea.vmem %s5, 48
      %v1563 = vld [vmem:[%s1562] sm:$0xf]
      %v1564 = vld [vmem:[%s1562 + $0x4] sm:$0xf]
      %v1565 = vld [vmem:[%s1562 + $0x8] sm:$0xf]
      %v1566 = vld [vmem:[%s1562 + $0xc] sm:$0xf]
      %v1571 = vunpack.c.l.b16 %v1563
      %v1572 = vunpack.c.l.b16 %v1564
      %v1573 = vunpack.c.l.b16 %v1565
      %v1574 = vunpack.c.l.b16 %v1566
      %v1575 = vpack.c.b16 %v1572, %v1571
      %v1576 = vpack.c.b16 %v1574, %v1573
      %1579 = vrot.lane.b32.xlu0 %v879, 32
      %v1580 = vpop.permute.xlu0 %1579
      %1581 = vrot.lane.b32.xlu0 %v882, 32
      %v1582 = vpop.permute.xlu0 %1581
      %1583 = vrot.lane.b32.xlu0 %v887, 32
      %v1584 = vpop.permute.xlu0 %1583
      %1585 = vrot.lane.b32.xlu0 %v890, 32
      %v1586 = vpop.permute.xlu0 %1585
      %1587 = vrot.lane.b32.xlu0 %v895, 32
      %v1588 = vpop.permute.xlu0 %1587
      %1589 = vrot.lane.b32.xlu0 %v898, 32
      %v1590 = vpop.permute.xlu0 %1589
      %1591 = vrot.lane.b32.xlu0 %v903, 32
      %v1592 = vpop.permute.xlu0 %1591
      %1593 = vrot.lane.b32.xlu0 %v906, 32
      %v1594 = vpop.permute.xlu0 %1593
      %v1604 = vsel %vm434, %v1558, 0
      %v1607 = vsel %vm434, %v1559, 0
      %v1610 = vsel %vm434, %v1560, 0
      %v1613 = vsel %vm434, %v1561, 0
      %1615 = vmatprep.subr.bf16.mxu0 0
      %1616 = vmatpush1.bf16.msra.mxu0 %v1575
      %1617 = vmatprep.subr.bf16.mxu0 0
      %1618 = vmatpush1.bf16.msra.mxu0 %v1576
      %1619 = vmatprep.subr.bf16.mxu0 0
      %1620 = vmatpush1.bf16.msra.mxu0 0
      %1621 = vmatprep.subr.bf16.mxu0 0
      %1622 = vmatpush1.bf16.msra.mxu0 0
      %1623 = vmatprep.subr.bf16.mxu0 0
      %1624 = vmatpush1.bf16.msra.mxu0 0
      %1625 = vmatprep.subr.bf16.mxu0 0
      %1626 = vmatpush1.bf16.msra.mxu0 0
      %1627 = vmatprep.subr.bf16.mxu0 0
      %1628 = vmatpush1.bf16.msra.mxu0 0
      %1629 = vmatprep.subr.bf16.mxu0 0
      %1630 = vmatpush1.bf16.msra.mxu0 0
      %1631 = vmatprep.subr.bf16.mxu0 0
      %1632 = vmatpush1.bf16.msra.mxu0 0
      %1633 = vmatprep.subr.bf16.mxu0 0
      %1634 = vmatpush1.bf16.msra.mxu0 0
      %1635 = vmatprep.subr.bf16.mxu0 0
      %1636 = vmatpush1.bf16.msra.mxu0 0
      %1637 = vmatprep.subr.bf16.mxu0 0
      %1638 = vmatpush1.bf16.msra.mxu0 0
      %1639 = vmatprep.subr.bf16.mxu0 0
      %1640 = vmatpush1.bf16.msra.mxu0 0
      %1641 = vmatprep.subr.bf16.mxu0 0
      %1642 = vmatpush1.bf16.msra.mxu0 0
      %1643 = vmatprep.subr.bf16.mxu0 0
      %1644 = vmatpush1.bf16.msra.mxu0 0
      %1645 = vmatprep.subr.bf16.mxu0 0
      %1646 = vmatpush1.bf16.msra.mxu0 0
      %1647 = vmatprep.mubr.bf16.mxu0 0
      %1648 = vmatmul.mubr.bf16.gmra.mrb[0].mxu0 %v1604
      %v1649 = vpop.f32.mrb[0].mxu0
      %v1650 = vadd.f32 %v1580, %v1649
      %v1651 = vpop.f32.mrb[0].mxu0
      %v1652 = vpop.f32.mrb[0].mxu0
      %v1653 = vadd.f32 %v1582, %v1652
      %v1654 = vpop.f32.mrb[0].mxu0
      %1655 = vmatprep.mubr.bf16.mxu0 0
      %1656 = vmatmul.mubr.bf16.gmra.mrb[0].mxu0 %v1607
      %v1657 = vpop.f32.mrb[0].mxu0
      %v1658 = vadd.f32 %v1584, %v1657
      %v1659 = vpop.f32.mrb[0].mxu0
      %v1660 = vpop.f32.mrb[0].mxu0
      %v1661 = vadd.f32 %v1586, %v1660
      %v1662 = vpop.f32.mrb[0].mxu0
      %1663 = vmatprep.mubr.bf16.mxu0 0
      %1664 = vmatmul.mubr.bf16.gmra.mrb[0].mxu0 %v1610
      %v1665 = vpop.f32.mrb[0].mxu0
      %v1666 = vadd.f32 %v1588, %v1665
      %v1667 = vpop.f32.mrb[0].mxu0
      %v1668 = vpop.f32.mrb[0].mxu0
      %v1669 = vadd.f32 %v1590, %v1668
      %v1670 = vpop.f32.mrb[0].mxu0
      %1671 = vmatprep.mubr.bf16.mxu0 0
      %1672 = vmatmul.mubr.bf16.gmra.mrb[0].mxu0 %v1613
      %v1673 = vpop.f32.mrb[0].mxu0
      %v1674 = vadd.f32 %v1592, %v1673
      %v1675 = vpop.f32.mrb[0].mxu0
      %v1676 = vpop.f32.mrb[0].mxu0
      %v1677 = vadd.f32 %v1594, %v1676
      %v1678 = vpop.f32.mrb[0].mxu0
      %1679 = vdwg.mxu0
      %v1680 = vmax.f32 %v1650, 0.0
      %v1681 = vmax.f32 %v1653, 0.0
      %v1682 = vmax.f32 %v1658, 0.0
      %v1683 = vmax.f32 %v1661, 0.0
      %v1684 = vmax.f32 %v1666, 0.0
      %v1685 = vmax.f32 %v1669, 0.0
      %v1686 = vmax.f32 %v1674, 0.0
      %v1687 = vmax.f32 %v1677, 0.0
      %v1688 = vpack.c.bf16 %v1681, %v1680
      %v1689 = vpack.c.bf16 %v1683, %v1682
      %v1690 = vpack.c.bf16 %v1685, %v1684
      %v1691 = vpack.c.bf16 %v1687, %v1686
      %v1692 = vld [vmem:[%s7] sm:$0xf]
      %v1693 = vld [vmem:[%s7 + $0x4] sm:$0xf]
      %v1694 = vld [vmem:[%s7 + $0x8] sm:$0xf]
      %v1695 = vld [vmem:[%s7 + $0xc] sm:$0xf]
      %v1696 = vld [vmem:[%s8] sm:$0x1]
      %v1698 = vlaneseq
      %v1699 = vshrl.u32 %v1698, 7
      %v1700 = vsub.s32 0, %v1699
      %v1701 = vrot.slane %v1696, %v1700
      %v1707 = vunpack.c.l.b16 %v1692
      %v1708 = vunpack.c.l.b16 %v1693
      %v1709 = vunpack.c.l.b16 %v1694
      %v1710 = vunpack.c.l.b16 %v1695
      %v1711 = vpack.c.b16 %v1708, %v1707
      %v1712 = vpack.c.b16 %v1710, %v1709
      %v1716 = vsel %vm434, %v1688, 0
      %v1719 = vsel %vm434, %v1689, 0
      %v1722 = vsel %vm434, %v1690, 0
      %v1725 = vsel %vm434, %v1691, 0
      %1727 = vmatprep.subr.bf16.mxu0 0
      %1728 = vmatpush1.bf16.msra.mxu0 %v1711
      %1729 = vmatprep.subr.bf16.mxu0 0
      %1730 = vmatpush1.bf16.msra.mxu0 %v1712
      %1731 = vmatprep.subr.bf16.mxu0 0
      %1732 = vmatpush1.bf16.msra.mxu0 0
      %1733 = vmatprep.subr.bf16.mxu0 0
      %1734 = vmatpush1.bf16.msra.mxu0 0
      %1735 = vmatprep.subr.bf16.mxu0 0
      %1736 = vmatpush1.bf16.msra.mxu0 0
      %1737 = vmatprep.subr.bf16.mxu0 0
      %1738 = vmatpush1.bf16.msra.mxu0 0
      %1739 = vmatprep.subr.bf16.mxu0 0
      %1740 = vmatpush1.bf16.msra.mxu0 0
      %1741 = vmatprep.subr.bf16.mxu0 0
      %1742 = vmatpush1.bf16.msra.mxu0 0
      %1743 = vmatprep.subr.bf16.mxu0 0
      %1744 = vmatpush1.bf16.msra.mxu0 0
      %1745 = vmatprep.subr.bf16.mxu0 0
      %1746 = vmatpush1.bf16.msra.mxu0 0
      %1747 = vmatprep.subr.bf16.mxu0 0
      %1748 = vmatpush1.bf16.msra.mxu0 0
      %1749 = vmatprep.subr.bf16.mxu0 0
      %1750 = vmatpush1.bf16.msra.mxu0 0
      %1751 = vmatprep.subr.bf16.mxu0 0
      %1752 = vmatpush1.bf16.msra.mxu0 0
      %1753 = vmatprep.subr.bf16.mxu0 0
      %1754 = vmatpush1.bf16.msra.mxu0 0
      %1755 = vmatprep.subr.bf16.mxu0 0
      %1756 = vmatpush1.bf16.msra.mxu0 0
      %1757 = vmatprep.subr.bf16.mxu0 0
      %1758 = vmatpush1.bf16.msra.mxu0 0
      %1759 = vmatprep.mubr.bf16.mxu0 0
      %1760 = vmatmul.mubr.bf16.gmra.mrb[0].mxu0 %v1716
      %v1761 = vpop.f32.mrb[0].mxu0
      %v1762 = vadd.f32 %v1701, %v1761
      %v1763 = vpop.f32.mrb[0].mxu0
      %v1764 = vpop.f32.mrb[0].mxu0
      %v1765 = vadd.f32 %v1701, %v1764
      %v1766 = vpop.f32.mrb[0].mxu0
      %1767 = vmatprep.mubr.bf16.mxu0 0
      %1768 = vmatmul.mubr.bf16.gmra.mrb[0].mxu0 %v1719
      %v1769 = vpop.f32.mrb[0].mxu0
      %v1770 = vadd.f32 %v1701, %v1769
      %v1771 = vpop.f32.mrb[0].mxu0
      %v1772 = vpop.f32.mrb[0].mxu0
      %v1773 = vadd.f32 %v1701, %v1772
      %v1774 = vpop.f32.mrb[0].mxu0
      %1775 = vmatprep.mubr.bf16.mxu0 0
      %1776 = vmatmul.mubr.bf16.gmra.mrb[0].mxu0 %v1722
      %v1777 = vpop.f32.mrb[0].mxu0
      %v1778 = vadd.f32 %v1701, %v1777
      %v1779 = vpop.f32.mrb[0].mxu0
      %v1780 = vpop.f32.mrb[0].mxu0
      %v1781 = vadd.f32 %v1701, %v1780
      %v1782 = vpop.f32.mrb[0].mxu0
      %1783 = vmatprep.mubr.bf16.mxu0 0
      %1784 = vmatmul.mubr.bf16.gmra.mrb[0].mxu0 %v1725
      %v1785 = vpop.f32.mrb[0].mxu0
      %v1786 = vadd.f32 %v1701, %v1785
      %v1787 = vpop.f32.mrb[0].mxu0
      %v1788 = vpop.f32.mrb[0].mxu0
      %v1789 = vadd.f32 %v1701, %v1788
      %v1790 = vpop.f32.mrb[0].mxu0
      %1791 = vdwg.mxu0
      %vm1792 = vcmask 64512
      %v1793 = vsel %vm1792, %v1762, -inf
      %1794 = vmax.xlane.f32.xlu0 %v1793
      %v1795 = vpop.xlane.xlu0 %1794
      %v1796 = vsel %vm1792, %v1765, -inf
      %1797 = vmax.xlane.f32.xlu0 %v1796
      %v1798 = vpop.xlane.xlu0 %1797
      %v1799 = vsel %vm1792, %v1770, -inf
      %1800 = vmax.xlane.f32.xlu0 %v1799
      %v1801 = vpop.xlane.xlu0 %1800
      %v1802 = vsel %vm1792, %v1773, -inf
      %1803 = vmax.xlane.f32.xlu0 %v1802
      %v1804 = vpop.xlane.xlu0 %1803
      %v1805 = vsel %vm1792, %v1778, -inf
      %1806 = vmax.xlane.f32.xlu0 %v1805
      %v1807 = vpop.xlane.xlu0 %1806
      %v1808 = vsel %vm1792, %v1781, -inf
      %1809 = vmax.xlane.f32.xlu0 %v1808
      %v1810 = vpop.xlane.xlu0 %1809
      %v1811 = vsel %vm1792, %v1786, -inf
      %1812 = vmax.xlane.f32.xlu0 %v1811
      %v1813 = vpop.xlane.xlu0 %1812
      %v1814 = vsel %vm1792, %v1789, -inf
      %1815 = vmax.xlane.f32.xlu0 %v1814
      %v1816 = vpop.xlane.xlu0 %1815
      %v1817 = vsub.f32 %v1762, %v1795
      %v1818 = vsub.f32 %v1765, %v1798
      %v1819 = vsub.f32 %v1770, %v1801
      %v1820 = vsub.f32 %v1773, %v1804
      %v1821 = vsub.f32 %v1778, %v1807
      %v1822 = vsub.f32 %v1781, %v1810
      %v1823 = vsub.f32 %v1786, %v1813
      %v1824 = vsub.f32 %v1789, %v1816
      %v1825 = vmul.f32 %v1817, 1.442695
      %v1826 = vpow.pop %v1825
      %v1827 = vmul.f32 %v1818, 1.442695
      %v1828 = vpow.pop %v1827
      %v1829 = vmul.f32 %v1819, 1.442695
      %v1830 = vpow.pop %v1829
      %v1831 = vmul.f32 %v1820, 1.442695
      %v1832 = vpow.pop %v1831
      %v1833 = vmul.f32 %v1821, 1.442695
      %v1834 = vpow.pop %v1833
      %v1835 = vmul.f32 %v1822, 1.442695
      %v1836 = vpow.pop %v1835
      %v1837 = vmul.f32 %v1823, 1.442695
      %v1838 = vpow.pop %v1837
      %v1839 = vmul.f32 %v1824, 1.442695
      %v1840 = vpow.pop %v1839
      %v1841 = vsel %vm1792, %v1826, 0.0
      %1842 = vadd.xlane.f32.xlu0 %v1841
      %v1843 = vpop.xlane.xlu0 %1842
      %v1844 = vsel %vm1792, %v1828, 0.0
      %1845 = vadd.xlane.f32.xlu0 %v1844
      %v1846 = vpop.xlane.xlu0 %1845
      %v1847 = vsel %vm1792, %v1830, 0.0
      %1848 = vadd.xlane.f32.xlu0 %v1847
      %v1849 = vpop.xlane.xlu0 %1848
      %v1850 = vsel %vm1792, %v1832, 0.0
      %1851 = vadd.xlane.f32.xlu0 %v1850
      %v1852 = vpop.xlane.xlu0 %1851
      %v1853 = vsel %vm1792, %v1834, 0.0
      %1854 = vadd.xlane.f32.xlu0 %v1853
      %v1855 = vpop.xlane.xlu0 %1854
      %v1856 = vsel %vm1792, %v1836, 0.0
      %1857 = vadd.xlane.f32.xlu0 %v1856
      %v1858 = vpop.xlane.xlu0 %1857
      %v1859 = vsel %vm1792, %v1838, 0.0
      %1860 = vadd.xlane.f32.xlu0 %v1859
      %v1861 = vpop.xlane.xlu0 %1860
      %v1862 = vsel %vm1792, %v1840, 0.0
      %1863 = vadd.xlane.f32.xlu0 %v1862
      %v1864 = vpop.xlane.xlu0 %1863
      %v1865 = vlog2.pop %v1843
      %v1866 = vmul.f32 %v1865, 0.6931472
      %v1867 = vlog2.pop %v1846
      %v1868 = vmul.f32 %v1867, 0.6931472
      %v1869 = vlog2.pop %v1849
      %v1870 = vmul.f32 %v1869, 0.6931472
      %v1871 = vlog2.pop %v1852
      %v1872 = vmul.f32 %v1871, 0.6931472
      %v1873 = vlog2.pop %v1855
      %v1874 = vmul.f32 %v1873, 0.6931472
      %v1875 = vlog2.pop %v1858
      %v1876 = vmul.f32 %v1875, 0.6931472
      %v1877 = vlog2.pop %v1861
      %v1878 = vmul.f32 %v1877, 0.6931472
      %v1879 = vlog2.pop %v1864
      %v1880 = vmul.f32 %v1879, 0.6931472
      %v1881 = vadd.f32 %v1866, %v1795
      %v1882 = vadd.f32 %v1868, %v1798
      %v1883 = vadd.f32 %v1870, %v1801
      %v1884 = vadd.f32 %v1872, %v1804
      %v1885 = vadd.f32 %v1874, %v1807
      %v1886 = vadd.f32 %v1876, %v1810
      %v1887 = vadd.f32 %v1878, %v1813
      %v1888 = vadd.f32 %v1880, %v1816
      %v1889 = vsub.f32 %v1762, %v1881
      %v1890 = vsub.f32 %v1765, %v1882
      %v1891 = vsub.f32 %v1770, %v1883
      %v1892 = vsub.f32 %v1773, %v1884
      %v1893 = vsub.f32 %v1778, %v1885
      %v1894 = vsub.f32 %v1781, %v1886
      %v1895 = vsub.f32 %v1786, %v1887
      %v1896 = vsub.f32 %v1789, %v1888
      %1897 = vst.msk [vmem:[%s372] sm:$0xff] %vm1792, %v1889
      %1898 = vst.msk [vmem:[%s372 + $0x8] sm:$0xff] %vm1792, %v1890
      %1899 = vst.msk [vmem:[%s372 + $0x10] sm:$0xff] %vm1792, %v1891
      %1900 = vst.msk [vmem:[%s372 + $0x18] sm:$0xff] %vm1792, %v1892
      %1901 = vst.msk [vmem:[%s372 + $0x20] sm:$0xff] %vm1792, %v1893
      %1902 = vst.msk [vmem:[%s372 + $0x28] sm:$0xff] %vm1792, %v1894
      %1903 = vst.msk [vmem:[%s372 + $0x30] sm:$0xff] %vm1792, %v1895
      %1904 = vst.msk [vmem:[%s372 + $0x38] sm:$0xff] %vm1792, %v1896
      %p1905 = scmp.lt.s32.totalorder %s20, 3
      %s1906 = scalar_select %p1905, %s20, 3
      %s1907 = smul.addr %s1906, 8
      %s1908 = smul.addr %s1907, 8
      %s1909 = scalar_lea.vmem %s9, %s1908
      // Predicated region
      $region57: #{gcnii_forward.1} parent=55 // pred_check
        %p1910 = pneg %p242
      $region58: #{gcnii_forward.1} parent=55 // pred_check_branch
        %1912 = sbr.rel (%p1910) target = $region60
      $region59: #{gcnii_forward.1} parent=55 // pred_region
        _
      $region60: #{gcnii_forward.1} parent=55 // pred_fallthru
        _
    $region56: #{gcnii_forward.1} parent=5 // pred_fallthru
      _
    %p1913 = scmp.le.s32.totalorder 2, %s15
    // Predicated region
    $region61: #{gcnii_forward.1} parent=5 // pred_check
      %p1914 = pneg %p1913
    $region62: #{gcnii_forward.1} parent=5 // pred_check_branch
      %1916 = sbr.rel (%p1914) target = $region64
    $region63: #{gcnii_forward.1} parent=5 // pred_region
      %s1917 = ssub.s32 %s15, 2
      // Predicated region
      $region65: #{gcnii_forward.1} parent=63 // pred_check
        %p1918 = pneg %p248
      $region66: #{gcnii_forward.1} parent=63 // pred_check_branch
        %1920 = sbr.rel (%p1918) target = $region68
      $region67: #{gcnii_forward.1} parent=63 // pred_region
        %p1921 = scmp.lt.s32.totalorder %s21, 3
        %s1922 = scalar_select %p1921, %s21, 3
        %s1923 = smul.addr %s1922, 8
        %s1924 = smul.addr %s1923, 8
        %s1925 = scalar_lea.vmem %s9, %s1924
      $region68: #{gcnii_forward.1} parent=63 // pred_fallthru
        _
    $region64: #{gcnii_forward.1} parent=5 // pred_fallthru
      _
  $region6: #{gcnii_forward.1} parent=0 // loop_footer
    %s19 = sadd.s32 1, %s15
  $region7: #{gcnii_forward.1} parent=0 // loop_footer_branch
    %14 = sbr.rel target = $region3
  $region8: #{gcnii_forward.1} parent=0 // loop_exit
    _

</llo_original>
